<compile_context>
chip_gen: v7x
topology: tpu7x:2x2x1
jax: 0.10.0
libtpu: 0.0.40
codegen_flags: <defaults>
</compile_context>

<pallas_src>
import jax
import jax.numpy as jnp
from jax import lax
from jax.experimental import pallas as pl
from jax.experimental.pallas import tpu as pltpu

START = -2            # row/col index L-2
STOP = -1             # row/col index L-1
BP_DTYPE = jnp.int8   # back-pointer tag ids fit in 8 bits


def _tree_max_argmax(vals, idxs):
    """Balanced-tree running (max, argmax) over a list of equal-shaped candidates.

    Strict '>' keeps the left operand on ties; adjacent pairing means the left
    operand's indices are always the smaller ones, so ties resolve to the smallest
    index — identical to jnp.argmax / the original serial compare chain."""
    vals = list(vals)
    idxs = list(idxs)
    while len(vals) > 1:
        nvals, nidxs = [], []
        for a in range(0, len(vals) - 1, 2):
            take = vals[a + 1] > vals[a]
            nvals.append(jnp.where(take, vals[a + 1], vals[a]))
            nidxs.append(jnp.where(take, idxs[a + 1], idxs[a]))
        if len(vals) % 2:
            nvals.append(vals[-1])
            nidxs.append(idxs[-1])
        vals, idxs = nvals, nidxs
    return vals[0], idxs[0]


def _viterbi_kernel(feats_ref, len_ref, trans_ref, transT_ref,
                    decode_ref, score_ref, bp_ref):
    # feats_ref : (T, L, Bt) f32   time-major, labels in sublanes, batch in lanes
    # len_ref   : (1, Bt) i32      per-sequence lengths (prefix mask, >= 1)
    # trans_ref : (L, L) f32       trans[p, c]
    # transT_ref: (L, L) f32       transT[c, p] = trans[p, c]
    # decode_ref: (T, Bt) i32      score_ref : (1, Bt) f32
    # bp_ref    : (T, L, Bt) i8    VMEM scratch (back-pointers)
    T, L, B = feats_ref.shape
    trans = trans_ref[...]                                     # (L, L)
    transT = transT_ref[...]                                   # (L, L)
    lengths = len_ref[...]                                     # (1, B)

    # Hoisted loop-invariant lane-broadcasts: trans_cols[p][c, b] = trans[p, c].
    trans_cols = [jnp.broadcast_to(transT[:, p:p + 1], (L, B)) for p in range(L)]

    feat0 = feats_ref[pl.ds(0, 1), :, :][0]                    # (L, B)
    init0 = trans_cols[L - 2] + feat0                          # init[c,b] = trans[START,c] + feat0[c,b]

    unroll = min(8, max(T - 1, 1))

    def viterbi_max(prev_var):
        # best[c,b] = max_p prev_var[p,b] + trans[p,c]; argmax keeps smallest p on ties.
        # L independent candidate adds + log2(L)-deep tree of compare/selects.
        vals = [prev_var[p:p + 1, :] + trans_cols[p] for p in range(L)]   # each (L, B)
        idxs = [jnp.int32(p) for p in range(L)]
        return _tree_max_argmax(vals, idxs)

    def fwd_body(t, carry):
        prev_var, last_var = carry                             # each (L, B)
        feat_t = feats_ref[pl.ds(t, 1), :, :][0]               # (L, B)
        best, best_id = viterbi_max(prev_var)
        new_var = best + feat_t
        valid = t < lengths                                    # (1, B); mask is a contiguous prefix
        best_id = jnp.where(valid, best_id, 0)                 # masked_fill_(reverse_mask, 0)
        bp_ref[pl.ds(t - 1, 1), :, :] = best_id.astype(BP_DTYPE)[None, :, :]
        last_var = jnp.where(t == lengths - 1, new_var, last_var)  # partition_history gather
        return new_var, last_var

    _, last_var = lax.fori_loop(1, T, fwd_body, (init0, init0), unroll=unroll)

    # Final transition into STOP: score/pointer = max/argmax_p last_var[p] + trans[p, STOP].
    final_col = last_var + trans[:, L - 1:L]                   # (L, B)
    fvals = [final_col[p:p + 1, :] for p in range(L)]          # each (1, B)
    fidxs = [jnp.int32(p) for p in range(L)]
    best, ptr0 = _tree_max_argmax(fvals, fidxs)
    score_ref[...] = best                                      # path score (max into STOP)
    decode_ref[pl.ds(T - 1, 1), :] = ptr0

    # Backtrace: per lane, select the sublane indexed by `pointer` from each bp row.
    sub_iota = lax.broadcasted_iota(jnp.int32, (L, B), 0)

    def bwd_body(j, pointer):
        idx = T - 2 - j
        row = bp_ref[pl.ds(idx, 1), :, :][0].astype(jnp.int32)     # (L, B)
        new_ptr = jnp.sum(jnp.where(sub_iota == pointer, row, 0),
                          axis=0, keepdims=True)                   # (1, B) one-hot gather
        # torch scatter_ of pointer into back_points at t == length-1
        new_ptr = jnp.where(idx == lengths - 1, ptr0, new_ptr)
        decode_ref[pl.ds(idx, 1), :] = new_ptr
        return new_ptr

    lax.fori_loop(0, T - 1, bwd_body, ptr0, unroll=unroll)


def _pick_b_tile(batch):
    """Lane tile: 256 lanes (2 vregs/op) when the grid still keeps >= 2 steps
    (so v7x's two TensorCores both get work); otherwise 128."""
    b128 = pl.cdiv(batch, 128) * 128
    return 256 if b128 >= 512 else 128


def _vmem_limit_bytes(T, L, b_tile):
    bp_itemsize = jnp.iinfo(BP_DTYPE).bits // 8
    feats_blk = T * L * b_tile * 4           # f32 input block (double-buffered)
    bp_blk = T * L * b_tile * bp_itemsize    # back-pointer scratch (single buffer)
    dec_blk = T * b_tile * 4                 # decode output block (double-buffered)
    small = 2 * L * L * 4 + 2 * b_tile * 4   # trans + transT + lengths + score blocks
    footprint = 2 * feats_blk + bp_blk + 2 * dec_blk + 2 * small + (2 << 20)
    # Never below the v6e/v7x default scoped limit; cap under physical VMEM.
    return int(min(max(footprint, 32 << 20), 100 << 20))


def viterbi_decode_time_major(feats_tlb, lengths, transitions):
    """Relayout-free entry point.

    feats_tlb : (T, L, B) f32 — time-major, batch in the minor (lane) dim.
    lengths   : (B,) int — per-sequence valid length (>= 1, prefix mask).
    returns   : (path_score (B,) f32, decode (T, B) int32)
    """
    T, L, B = feats_tlb.shape
    b_tile = _pick_b_tile(B)
    b_pad = pl.cdiv(B, b_tile) * b_tile
    if b_pad != B:
        feats_tlb = jnp.pad(feats_tlb, ((0, 0), (0, 0), (0, b_pad - B)))
        lengths = jnp.pad(lengths, (0, b_pad - B), constant_values=1)
    lengths2 = lengths.reshape(1, b_pad).astype(jnp.int32)

    # TODO(synk): for very long T at wide b_tile on v7x, stream feats over T
    # (memory_space=pl.ANY + double-buffered DMA) instead of one (T, L, b_tile) block.
    grid_spec = pltpu.PrefetchScalarGridSpec(
        num_scalar_prefetch=0,
        grid=(b_pad // b_tile,),
        in_specs=[
            pl.BlockSpec((T, L, b_tile), lambda i: (0, 0, i)),   # feats (batch tiled in lanes)
            pl.BlockSpec((1, b_tile), lambda i: (0, i)),         # lengths
            pl.BlockSpec((L, L), lambda i: (0, 0)),              # transitions
            pl.BlockSpec((L, L), lambda i: (0, 0)),              # transitions^T
        ],
        out_specs=[
            pl.BlockSpec((T, b_tile), lambda i: (0, i)),         # decoded paths (lane-dense)
            pl.BlockSpec((1, b_tile), lambda i: (0, i)),         # path scores  (lane-dense)
        ],
        scratch_shapes=[pltpu.VMEM((T, L, b_tile), BP_DTYPE)],   # int8 back-pointers
    )
    decode, score = pl.pallas_call(
        _viterbi_kernel,
        grid_spec=grid_spec,
        out_shape=(jax.ShapeDtypeStruct((T, b_pad), jnp.int32),
                   jax.ShapeDtypeStruct((1, b_pad), jnp.float32)),
        compiler_params=pltpu.CompilerParams(
            dimension_semantics=("parallel",),               # batch tiles independent (v7x: 2 TCs)
            vmem_limit_bytes=_vmem_limit_bytes(T, L, b_tile)),
    )(feats_tlb, lengths2, transitions, jnp.transpose(transitions))
    return score[0, :B], decode[:, :B]


def viterbi_decode(feats, mask, transitions):
    """PyTorch-layout entry: feats (B, T, L), mask (B, T) -> (score (B,), decode (B, T))."""
    B, T, L = feats.shape
    mask = mask.astype(jnp.int32)
    # Prefix-mask assumption (matches the module); clamp to >=1 so length-0 rows
    # cannot produce out-of-range back-pointer indices inside the kernel.
    lengths = jnp.maximum(jnp.sum(mask, axis=1), 1).astype(jnp.int32)
    # TODO(synk): this relayout is a full HBM read+write of feats; producers that can
    # emit (T, L, B) directly should call viterbi_decode_time_major and keep (T, B) output.
    feats_tlb = jnp.transpose(feats, (1, 2, 0))
    score, decode_tb = viterbi_decode_time_major(feats_tlb, lengths, transitions)
    return score, jnp.transpose(decode_tb)


def viterbi_ref(feats, mask, trans):
    """Pure-JAX mirror of Partial_CRF._viterbi_decode for verification."""
    B, T, L = feats.shape
    mask = mask.astype(jnp.int32)
    lengths = jnp.sum(mask, axis=1)
    init_var = trans[L - 2, :][None, :] + feats[:, 0, :]
    part_hist, bps = [init_var], []
    for t in range(1, T):
        scores = init_var[:, :, None] + trans[None] + feats[:, t, :][:, None, :]
        new_var = jnp.max(scores, axis=1)
        best_id = jnp.argmax(scores, axis=1).astype(jnp.int32)
        best_id = jnp.where(mask[:, t:t + 1] == 0, 0, best_id)
        init_var = new_var
        part_hist.append(new_var)
        bps.append(best_id)
    part_hist = jnp.stack(part_hist, axis=1)                      # (B, T, L)
    last_var = jnp.take_along_axis(
        part_hist, (lengths - 1)[:, None, None], axis=1)[:, 0, :]
    final = last_var[:, :, None] + trans[None]
    pointer = jnp.argmax(final, axis=1)[:, L - 1].astype(jnp.int32)
    path_score = jnp.max(final, axis=1)[:, L - 1]
    bps.append(jnp.zeros((B, L), jnp.int32))
    bp = jnp.stack(bps, axis=1)                                   # (B, T, L)
    t_idx = jnp.arange(T)[None, :, None]
    bp = jnp.where(t_idx == (lengths - 1)[:, None, None],
                   pointer[:, None, None], bp)
    decode = [None] * T
    decode[T - 1] = pointer
    ptr = pointer
    for idx in range(T - 2, -1, -1):
        ptr = jnp.take_along_axis(bp[:, idx, :], ptr[:, None], axis=1)[:, 0]
        decode[idx] = ptr
    return path_score, jnp.stack(decode, axis=1)


if __name__ == "__main__":
    key = jax.random.PRNGKey(0)
    k1, k2 = jax.random.split(key)

    label_size = 6                 # "real" labels; CRF adds START/STOP -> L = 8
    B, T = 2, 8
    L = label_size + 2

    # Deterministic parameter init mirroring Partial_CRF.__init__ (plus a small
    # random perturbation so the decode is non-degenerate).
    trans = 0.1 * jax.random.normal(k1, (L, L), jnp.float32)
    neg = jnp.float32(-100000.0)
    trans = trans.at[:, L - 2].set(neg)   # [:, START]
    trans = trans.at[L - 1, :].set(neg)   # [STOP, :]
    trans = trans.at[:, 0].set(neg)       # [:, 0]
    trans = trans.at[0, :].set(neg)       # [0, :]

    feats = jax.random.normal(k2, (B, T, L), jnp.float32)
    lengths = jnp.array([T, 5], jnp.int32)
    mask = (jnp.arange(T)[None, :] < lengths[:, None]).astype(jnp.int32)

    # TODO(synk): the original forward(emits) omits the mask and expects
    # (path_score, best_path); we implement the intended (feats, mask) decode.
    score, decode = viterbi_decode(feats, mask, trans)
    jax.block_until_ready((score, decode))

    ref_score, ref_decode = viterbi_ref(feats, mask, trans)
    assert jnp.array_equal(decode, ref_decode), (decode, ref_decode)
    assert jnp.allclose(score, ref_score, rtol=1e-5, atol=1e-5), (score, ref_score)
    print("KERNEL_OK")
</pallas_src>

<mosaic_0001>
module attributes {stable_mosaic.version = 11 : i64} {
  func.func @_viterbi_kernel(%arg0: i32, %arg1: memref<8x8x128xf32, #tpu.memory_space<vmem>>, %arg2: memref<1x128xi32, #tpu.memory_space<vmem>>, %arg3: memref<8x8xf32, #tpu.memory_space<vmem>>, %arg4: memref<8x8xf32, #tpu.memory_space<vmem>>, %arg5: memref<8x128xi32, #tpu.memory_space<vmem>>, %arg6: memref<1x128xf32, #tpu.memory_space<vmem>>, %arg7: memref<8x8x128xi8, #tpu.memory_space<vmem>>) attributes {dimension_semantics = [#tpu.dimension_semantics<parallel>], iteration_bounds = array<i64: 1>, scalar_prefetch = 0 : i64, scratch_operands = 1 : i64, tpu.core_type = #tpu.core_type<tc>, window_params = [{transform_indices = @transform_0, window_bounds = array<i64: 8, 8, 128>}, {transform_indices = @transform_1, window_bounds = array<i64: 1, 128>}, {pipeline_mode = #tpu.pipeline_mode<synchronous>, transform_indices = @transform_2, window_bounds = array<i64: 8, 8>}, {pipeline_mode = #tpu.pipeline_mode<synchronous>, transform_indices = @transform_3, window_bounds = array<i64: 8, 8>}, {transform_indices = @transform_4, window_bounds = array<i64: 8, 128>}, {transform_indices = @transform_5, window_bounds = array<i64: 1, 128>}]} {
    %c0 = arith.constant 0 : index
    %c0_0 = arith.constant 0 : index
    %0 = vector.load %arg3[%c0, %c0_0] : memref<8x8xf32, #tpu.memory_space<vmem>>, vector<8x8xf32>
    %c0_1 = arith.constant 0 : index
    %c0_2 = arith.constant 0 : index
    %1 = vector.load %arg4[%c0_1, %c0_2] : memref<8x8xf32, #tpu.memory_space<vmem>>, vector<8x8xf32>
    %c0_3 = arith.constant 0 : index
    %c0_4 = arith.constant 0 : index
    %2 = vector.load %arg2[%c0_3, %c0_4] : memref<1x128xi32, #tpu.memory_space<vmem>>, vector<1x128xi32>
    %3 = vector.extract_strided_slice %1 {offsets = [0, 0], sizes = [8, 1], strides = [1, 1]} : vector<8x8xf32> to vector<8x1xf32>
    %4 = vector.shape_cast %3 : vector<8x1xf32> to vector<8x1xf32>
    %5 = vector.broadcast %4 : vector<8x1xf32> to vector<8x128xf32>
    %6 = vector.extract_strided_slice %1 {offsets = [0, 1], sizes = [8, 1], strides = [1, 1]} : vector<8x8xf32> to vector<8x1xf32>
    %7 = vector.shape_cast %6 : vector<8x1xf32> to vector<8x1xf32>
    %8 = vector.broadcast %7 : vector<8x1xf32> to vector<8x128xf32>
    %9 = vector.extract_strided_slice %1 {offsets = [0, 2], sizes = [8, 1], strides = [1, 1]} : vector<8x8xf32> to vector<8x1xf32>
    %10 = vector.shape_cast %9 : vector<8x1xf32> to vector<8x1xf32>
    %11 = vector.broadcast %10 : vector<8x1xf32> to vector<8x128xf32>
    %12 = vector.extract_strided_slice %1 {offsets = [0, 3], sizes = [8, 1], strides = [1, 1]} : vector<8x8xf32> to vector<8x1xf32>
    %13 = vector.shape_cast %12 : vector<8x1xf32> to vector<8x1xf32>
    %14 = vector.broadcast %13 : vector<8x1xf32> to vector<8x128xf32>
    %15 = vector.extract_strided_slice %1 {offsets = [0, 4], sizes = [8, 1], strides = [1, 1]} : vector<8x8xf32> to vector<8x1xf32>
    %16 = vector.shape_cast %15 : vector<8x1xf32> to vector<8x1xf32>
    %17 = vector.broadcast %16 : vector<8x1xf32> to vector<8x128xf32>
    %18 = vector.extract_strided_slice %1 {offsets = [0, 5], sizes = [8, 1], strides = [1, 1]} : vector<8x8xf32> to vector<8x1xf32>
    %19 = vector.shape_cast %18 : vector<8x1xf32> to vector<8x1xf32>
    %20 = vector.broadcast %19 : vector<8x1xf32> to vector<8x128xf32>
    %21 = vector.extract_strided_slice %1 {offsets = [0, 6], sizes = [8, 1], strides = [1, 1]} : vector<8x8xf32> to vector<8x1xf32>
    %22 = vector.shape_cast %21 : vector<8x1xf32> to vector<8x1xf32>
    %23 = vector.broadcast %22 : vector<8x1xf32> to vector<8x128xf32>
    %24 = vector.extract_strided_slice %1 {offsets = [0, 7], sizes = [8, 1], strides = [1, 1]} : vector<8x8xf32> to vector<8x1xf32>
    %25 = vector.shape_cast %24 : vector<8x1xf32> to vector<8x1xf32>
    %26 = vector.broadcast %25 : vector<8x1xf32> to vector<8x128xf32>
    %c0_5 = arith.constant 0 : index
    %c0_6 = arith.constant 0 : index
    %c0_7 = arith.constant 0 : index
    %27 = vector.load %arg1[%c0_5, %c0_6, %c0_7] : memref<8x8x128xf32, #tpu.memory_space<vmem>>, vector<1x8x128xf32>
    %28 = vector.shape_cast %27 : vector<1x8x128xf32> to vector<8x128xf32>
    %29 = arith.addf %23, %28 : vector<8x128xf32>
    %c1_i32 = arith.constant 1 : i32
    %30 = arith.index_cast %c1_i32 : i32 to index
    %c0_8 = arith.constant 0 : index
    %c0_9 = arith.constant 0 : index
    %31 = vector.load %arg1[%30, %c0_8, %c0_9] : memref<8x8x128xf32, #tpu.memory_space<vmem>>, vector<1x8x128xf32>
    %32 = vector.shape_cast %31 : vector<1x8x128xf32> to vector<8x128xf32>
    %33 = vector.extract_strided_slice %29 {offsets = [0, 0], sizes = [1, 128], strides = [1, 1]} : vector<8x128xf32> to vector<1x128xf32>
    %34 = vector.broadcast %33 : vector<1x128xf32> to vector<8x128xf32>
    %35 = arith.addf %34, %5 : vector<8x128xf32>
    %36 = vector.extract_strided_slice %29 {offsets = [1, 0], sizes = [1, 128], strides = [1, 1]} : vector<8x128xf32> to vector<1x128xf32>
    %37 = vector.broadcast %36 : vector<1x128xf32> to vector<8x128xf32>
    %38 = arith.addf %37, %8 : vector<8x128xf32>
    %39 = vector.extract_strided_slice %29 {offsets = [2, 0], sizes = [1, 128], strides = [1, 1]} : vector<8x128xf32> to vector<1x128xf32>
    %40 = vector.broadcast %39 : vector<1x128xf32> to vector<8x128xf32>
    %41 = arith.addf %40, %11 : vector<8x128xf32>
    %42 = vector.extract_strided_slice %29 {offsets = [3, 0], sizes = [1, 128], strides = [1, 1]} : vector<8x128xf32> to vector<1x128xf32>
    %43 = vector.broadcast %42 : vector<1x128xf32> to vector<8x128xf32>
    %44 = arith.addf %43, %14 : vector<8x128xf32>
    %45 = vector.extract_strided_slice %29 {offsets = [4, 0], sizes = [1, 128], strides = [1, 1]} : vector<8x128xf32> to vector<1x128xf32>
    %46 = vector.broadcast %45 : vector<1x128xf32> to vector<8x128xf32>
    %47 = arith.addf %46, %17 : vector<8x128xf32>
    %48 = vector.extract_strided_slice %29 {offsets = [5, 0], sizes = [1, 128], strides = [1, 1]} : vector<8x128xf32> to vector<1x128xf32>
    %49 = vector.broadcast %48 : vector<1x128xf32> to vector<8x128xf32>
    %50 = arith.addf %49, %20 : vector<8x128xf32>
    %51 = vector.extract_strided_slice %29 {offsets = [6, 0], sizes = [1, 128], strides = [1, 1]} : vector<8x128xf32> to vector<1x128xf32>
    %52 = vector.broadcast %51 : vector<1x128xf32> to vector<8x128xf32>
    %53 = arith.addf %52, %23 : vector<8x128xf32>
    %54 = vector.extract_strided_slice %29 {offsets = [7, 0], sizes = [1, 128], strides = [1, 1]} : vector<8x128xf32> to vector<1x128xf32>
    %55 = vector.broadcast %54 : vector<1x128xf32> to vector<8x128xf32>
    %56 = arith.addf %55, %26 : vector<8x128xf32>
    %57 = arith.cmpf ogt, %38, %35 : vector<8x128xf32>
    %58 = arith.select %57, %38, %35 : vector<8x128xi1>, vector<8x128xf32>
    %c1_i32_10 = arith.constant 1 : i32
    %c0_i32 = arith.constant 0 : i32
    %59 = vector.broadcast %c1_i32_10 : i32 to vector<8x128xi32>
    %60 = vector.broadcast %c0_i32 : i32 to vector<8x128xi32>
    %61 = arith.select %57, %59, %60 : vector<8x128xi1>, vector<8x128xi32>
    %62 = arith.cmpf ogt, %44, %41 : vector<8x128xf32>
    %63 = arith.select %62, %44, %41 : vector<8x128xi1>, vector<8x128xf32>
    %c3_i32 = arith.constant 3 : i32
    %c2_i32 = arith.constant 2 : i32
    %64 = vector.broadcast %c3_i32 : i32 to vector<8x128xi32>
    %65 = vector.broadcast %c2_i32 : i32 to vector<8x128xi32>
    %66 = arith.select %62, %64, %65 : vector<8x128xi1>, vector<8x128xi32>
    %67 = arith.cmpf ogt, %50, %47 : vector<8x128xf32>
    %68 = arith.select %67, %50, %47 : vector<8x128xi1>, vector<8x128xf32>
    %c5_i32 = arith.constant 5 : i32
    %c4_i32 = arith.constant 4 : i32
    %69 = vector.broadcast %c5_i32 : i32 to vector<8x128xi32>
    %70 = vector.broadcast %c4_i32 : i32 to vector<8x128xi32>
    %71 = arith.select %67, %69, %70 : vector<8x128xi1>, vector<8x128xi32>
    %72 = arith.cmpf ogt, %56, %53 : vector<8x128xf32>
    %73 = arith.select %72, %56, %53 : vector<8x128xi1>, vector<8x128xf32>
    %c7_i32 = arith.constant 7 : i32
    %c6_i32 = arith.constant 6 : i32
    %74 = vector.broadcast %c7_i32 : i32 to vector<8x128xi32>
    %75 = vector.broadcast %c6_i32 : i32 to vector<8x128xi32>
    %76 = arith.select %72, %74, %75 : vector<8x128xi1>, vector<8x128xi32>
    %77 = arith.cmpf ogt, %63, %58 : vector<8x128xf32>
    %78 = arith.select %77, %63, %58 : vector<8x128xi1>, vector<8x128xf32>
    %79 = arith.select %77, %66, %61 : vector<8x128xi1>, vector<8x128xi32>
    %80 = arith.cmpf ogt, %73, %68 : vector<8x128xf32>
    %81 = arith.select %80, %73, %68 : vector<8x128xi1>, vector<8x128xf32>
    %82 = arith.select %80, %76, %71 : vector<8x128xi1>, vector<8x128xi32>
    %83 = arith.cmpf ogt, %81, %78 : vector<8x128xf32>
    %84 = arith.select %83, %81, %78 : vector<8x128xi1>, vector<8x128xf32>
    %85 = arith.select %83, %82, %79 : vector<8x128xi1>, vector<8x128xi32>
    %86 = arith.addf %84, %32 : vector<8x128xf32>
    %87 = vector.broadcast %c1_i32 : i32 to vector<1x128xi32>
    %88 = arith.cmpi slt, %87, %2 : vector<1x128xi32>
    %c0_i32_11 = arith.constant 0 : i32
    %89 = vector.shape_cast %88 : vector<1x128xi1> to vector<1x128xi1>
    %90 = vector.broadcast %89 : vector<1x128xi1> to vector<8x128xi1>
    %91 = vector.broadcast %c0_i32_11 : i32 to vector<8x128xi32>
    %92 = arith.select %90, %85, %91 : vector<8x128xi1>, vector<8x128xi32>
    %93 = arith.trunci %92 : vector<8x128xi32> to vector<8x128xi8>
    %94 = vector.shape_cast %93 : vector<8x128xi8> to vector<1x8x128xi8>
    %c1_i32_12 = arith.constant 1 : i32
    %95 = arith.subi %c1_i32, %c1_i32_12 : i32
    %96 = arith.index_cast %95 : i32 to index
    %c0_13 = arith.constant 0 : index
    %c0_14 = arith.constant 0 : index
    %97 = vector.load %arg7[%96, %c0_13, %c0_14] : memref<8x8x128xi8, #tpu.memory_space<vmem>>, vector<1x8x128xi8>
    tpu.vector_store %arg7[%96, %c0_13, %c0_14], %94 {strides = array<i32>} : memref<8x8x128xi8, #tpu.memory_space<vmem>>, vector<1x8x128xi8>,
    %c1_i32_15 = arith.constant 1 : i32
    %98 = vector.broadcast %c1_i32_15 : i32 to vector<1x128xi32>
    %99 = arith.subi %2, %98 : vector<1x128xi32>
    %100 = vector.broadcast %c1_i32 : i32 to vector<1x128xi32>
    %101 = arith.cmpi eq, %100, %99 : vector<1x128xi32>
    %102 = vector.shape_cast %101 : vector<1x128xi1> to vector<1x128xi1>
    %103 = vector.broadcast %102 : vector<1x128xi1> to vector<8x128xi1>
    %104 = arith.select %103, %86, %29 : vector<8x128xi1>, vector<8x128xf32>
    %c2_i32_16 = arith.constant 2 : i32
    %105 = arith.index_cast %c2_i32_16 : i32 to index
    %c0_17 = arith.constant 0 : index
    %c0_18 = arith.constant 0 : index
    %106 = vector.load %arg1[%105, %c0_17, %c0_18] : memref<8x8x128xf32, #tpu.memory_space<vmem>>, vector<1x8x128xf32>
    %107 = vector.shape_cast %106 : vector<1x8x128xf32> to vector<8x128xf32>
    %108 = vector.extract_strided_slice %86 {offsets = [0, 0], sizes = [1, 128], strides = [1, 1]} : vector<8x128xf32> to vector<1x128xf32>
    %109 = vector.broadcast %108 : vector<1x128xf32> to vector<8x128xf32>
    %110 = arith.addf %109, %5 : vector<8x128xf32>
    %111 = vector.extract_strided_slice %86 {offsets = [1, 0], sizes = [1, 128], strides = [1, 1]} : vector<8x128xf32> to vector<1x128xf32>
    %112 = vector.broadcast %111 : vector<1x128xf32> to vector<8x128xf32>
    %113 = arith.addf %112, %8 : vector<8x128xf32>
    %114 = vector.extract_strided_slice %86 {offsets = [2, 0], sizes = [1, 128], strides = [1, 1]} : vector<8x128xf32> to vector<1x128xf32>
    %115 = vector.broadcast %114 : vector<1x128xf32> to vector<8x128xf32>
    %116 = arith.addf %115, %11 : vector<8x128xf32>
    %117 = vector.extract_strided_slice %86 {offsets = [3, 0], sizes = [1, 128], strides = [1, 1]} : vector<8x128xf32> to vector<1x128xf32>
    %118 = vector.broadcast %117 : vector<1x128xf32> to vector<8x128xf32>
    %119 = arith.addf %118, %14 : vector<8x128xf32>
    %120 = vector.extract_strided_slice %86 {offsets = [4, 0], sizes = [1, 128], strides = [1, 1]} : vector<8x128xf32> to vector<1x128xf32>
    %121 = vector.broadcast %120 : vector<1x128xf32> to vector<8x128xf32>
    %122 = arith.addf %121, %17 : vector<8x128xf32>
    %123 = vector.extract_strided_slice %86 {offsets = [5, 0], sizes = [1, 128], strides = [1, 1]} : vector<8x128xf32> to vector<1x128xf32>
    %124 = vector.broadcast %123 : vector<1x128xf32> to vector<8x128xf32>
    %125 = arith.addf %124, %20 : vector<8x128xf32>
    %126 = vector.extract_strided_slice %86 {offsets = [6, 0], sizes = [1, 128], strides = [1, 1]} : vector<8x128xf32> to vector<1x128xf32>
    %127 = vector.broadcast %126 : vector<1x128xf32> to vector<8x128xf32>
    %128 = arith.addf %127, %23 : vector<8x128xf32>
    %129 = vector.extract_strided_slice %86 {offsets = [7, 0], sizes = [1, 128], strides = [1, 1]} : vector<8x128xf32> to vector<1x128xf32>
    %130 = vector.broadcast %129 : vector<1x128xf32> to vector<8x128xf32>
    %131 = arith.addf %130, %26 : vector<8x128xf32>
    %132 = arith.cmpf ogt, %113, %110 : vector<8x128xf32>
    %133 = arith.select %132, %113, %110 : vector<8x128xi1>, vector<8x128xf32>
    %c1_i32_19 = arith.constant 1 : i32
    %c0_i32_20 = arith.constant 0 : i32
    %134 = vector.broadcast %c1_i32_19 : i32 to vector<8x128xi32>
    %135 = vector.broadcast %c0_i32_20 : i32 to vector<8x128xi32>
    %136 = arith.select %132, %134, %135 : vector<8x128xi1>, vector<8x128xi32>
    %137 = arith.cmpf ogt, %119, %116 : vector<8x128xf32>
    %138 = arith.select %137, %119, %116 : vector<8x128xi1>, vector<8x128xf32>
    %c3_i32_21 = arith.constant 3 : i32
    %c2_i32_22 = arith.constant 2 : i32
    %139 = vector.broadcast %c3_i32_21 : i32 to vector<8x128xi32>
    %140 = vector.broadcast %c2_i32_22 : i32 to vector<8x128xi32>
    %141 = arith.select %137, %139, %140 : vector<8x128xi1>, vector<8x128xi32>
    %142 = arith.cmpf ogt, %125, %122 : vector<8x128xf32>
    %143 = arith.select %142, %125, %122 : vector<8x128xi1>, vector<8x128xf32>
    %c5_i32_23 = arith.constant 5 : i32
    %c4_i32_24 = arith.constant 4 : i32
    %144 = vector.broadcast %c5_i32_23 : i32 to vector<8x128xi32>
    %145 = vector.broadcast %c4_i32_24 : i32 to vector<8x128xi32>
    %146 = arith.select %142, %144, %145 : vector<8x128xi1>, vector<8x128xi32>
    %147 = arith.cmpf ogt, %131, %128 : vector<8x128xf32>
    %148 = arith.select %147, %131, %128 : vector<8x128xi1>, vector<8x128xf32>
    %c7_i32_25 = arith.constant 7 : i32
    %c6_i32_26 = arith.constant 6 : i32
    %149 = vector.broadcast %c7_i32_25 : i32 to vector<8x128xi32>
    %150 = vector.broadcast %c6_i32_26 : i32 to vector<8x128xi32>
    %151 = arith.select %147, %149, %150 : vector<8x128xi1>, vector<8x128xi32>
    %152 = arith.cmpf ogt, %138, %133 : vector<8x128xf32>
    %153 = arith.select %152, %138, %133 : vector<8x128xi1>, vector<8x128xf32>
    %154 = arith.select %152, %141, %136 : vector<8x128xi1>, vector<8x128xi32>
    %155 = arith.cmpf ogt, %148, %143 : vector<8x128xf32>
    %156 = arith.select %155, %148, %143 : vector<8x128xi1>, vector<8x128xf32>
    %157 = arith.select %155, %151, %146 : vector<8x128xi1>, vector<8x128xi32>
    %158 = arith.cmpf ogt, %156, %153 : vector<8x128xf32>
    %159 = arith.select %158, %156, %153 : vector<8x128xi1>, vector<8x128xf32>
    %160 = arith.select %158, %157, %154 : vector<8x128xi1>, vector<8x128xi32>
    %161 = arith.addf %159, %107 : vector<8x128xf32>
    %162 = vector.broadcast %c2_i32_16 : i32 to vector<1x128xi32>
    %163 = arith.cmpi slt, %162, %2 : vector<1x128xi32>
    %c0_i32_27 = arith.constant 0 : i32
    %164 = vector.shape_cast %163 : vector<1x128xi1> to vector<1x128xi1>
    %165 = vector.broadcast %164 : vector<1x128xi1> to vector<8x128xi1>
    %166 = vector.broadcast %c0_i32_27 : i32 to vector<8x128xi32>
    %167 = arith.select %165, %160, %166 : vector<8x128xi1>, vector<8x128xi32>
    %168 = arith.trunci %167 : vector<8x128xi32> to vector<8x128xi8>
    %169 = vector.shape_cast %168 : vector<8x128xi8> to vector<1x8x128xi8>
    %c1_i32_28 = arith.constant 1 : i32
    %170 = arith.subi %c2_i32_16, %c1_i32_28 : i32
    %171 = arith.index_cast %170 : i32 to index
    %c0_29 = arith.constant 0 : index
    %c0_30 = arith.constant 0 : index
    %172 = vector.load %arg7[%171, %c0_29, %c0_30] : memref<8x8x128xi8, #tpu.memory_space<vmem>>, vector<1x8x128xi8>
    tpu.vector_store %arg7[%171, %c0_29, %c0_30], %169 {strides = array<i32>} : memref<8x8x128xi8, #tpu.memory_space<vmem>>, vector<1x8x128xi8>,
    %c1_i32_31 = arith.constant 1 : i32
    %173 = vector.broadcast %c1_i32_31 : i32 to vector<1x128xi32>
    %174 = arith.subi %2, %173 : vector<1x128xi32>
    %175 = vector.broadcast %c2_i32_16 : i32 to vector<1x128xi32>
    %176 = arith.cmpi eq, %175, %174 : vector<1x128xi32>
    %177 = vector.shape_cast %176 : vector<1x128xi1> to vector<1x128xi1>
    %178 = vector.broadcast %177 : vector<1x128xi1> to vector<8x128xi1>
    %179 = arith.select %178, %161, %104 : vector<8x128xi1>, vector<8x128xf32>
    %c3_i32_32 = arith.constant 3 : i32
    %180 = arith.index_cast %c3_i32_32 : i32 to index
    %c0_33 = arith.constant 0 : index
    %c0_34 = arith.constant 0 : index
    %181 = vector.load %arg1[%180, %c0_33, %c0_34] : memref<8x8x128xf32, #tpu.memory_space<vmem>>, vector<1x8x128xf32>
    %182 = vector.shape_cast %181 : vector<1x8x128xf32> to vector<8x128xf32>
    %183 = vector.extract_strided_slice %161 {offsets = [0, 0], sizes = [1, 128], strides = [1, 1]} : vector<8x128xf32> to vector<1x128xf32>
    %184 = vector.broadcast %183 : vector<1x128xf32> to vector<8x128xf32>
    %185 = arith.addf %184, %5 : vector<8x128xf32>
    %186 = vector.extract_strided_slice %161 {offsets = [1, 0], sizes = [1, 128], strides = [1, 1]} : vector<8x128xf32> to vector<1x128xf32>
    %187 = vector.broadcast %186 : vector<1x128xf32> to vector<8x128xf32>
    %188 = arith.addf %187, %8 : vector<8x128xf32>
    %189 = vector.extract_strided_slice %161 {offsets = [2, 0], sizes = [1, 128], strides = [1, 1]} : vector<8x128xf32> to vector<1x128xf32>
    %190 = vector.broadcast %189 : vector<1x128xf32> to vector<8x128xf32>
    %191 = arith.addf %190, %11 : vector<8x128xf32>
    %192 = vector.extract_strided_slice %161 {offsets = [3, 0], sizes = [1, 128], strides = [1, 1]} : vector<8x128xf32> to vector<1x128xf32>
    %193 = vector.broadcast %192 : vector<1x128xf32> to vector<8x128xf32>
    %194 = arith.addf %193, %14 : vector<8x128xf32>
    %195 = vector.extract_strided_slice %161 {offsets = [4, 0], sizes = [1, 128], strides = [1, 1]} : vector<8x128xf32> to vector<1x128xf32>
    %196 = vector.broadcast %195 : vector<1x128xf32> to vector<8x128xf32>
    %197 = arith.addf %196, %17 : vector<8x128xf32>
    %198 = vector.extract_strided_slice %161 {offsets = [5, 0], sizes = [1, 128], strides = [1, 1]} : vector<8x128xf32> to vector<1x128xf32>
    %199 = vector.broadcast %198 : vector<1x128xf32> to vector<8x128xf32>
    %200 = arith.addf %199, %20 : vector<8x128xf32>
    %201 = vector.extract_strided_slice %161 {offsets = [6, 0], sizes = [1, 128], strides = [1, 1]} : vector<8x128xf32> to vector<1x128xf32>
    %202 = vector.broadcast %201 : vector<1x128xf32> to vector<8x128xf32>
    %203 = arith.addf %202, %23 : vector<8x128xf32>
    %204 = vector.extract_strided_slice %161 {offsets = [7, 0], sizes = [1, 128], strides = [1, 1]} : vector<8x128xf32> to vector<1x128xf32>
    %205 = vector.broadcast %204 : vector<1x128xf32> to vector<8x128xf32>
    %206 = arith.addf %205, %26 : vector<8x128xf32>
    %207 = arith.cmpf ogt, %188, %185 : vector<8x128xf32>
    %208 = arith.select %207, %188, %185 : vector<8x128xi1>, vector<8x128xf32>
    %c1_i32_35 = arith.constant 1 : i32
    %c0_i32_36 = arith.constant 0 : i32
    %209 = vector.broadcast %c1_i32_35 : i32 to vector<8x128xi32>
    %210 = vector.broadcast %c0_i32_36 : i32 to vector<8x128xi32>
    %211 = arith.select %207, %209, %210 : vector<8x128xi1>, vector<8x128xi32>
    %212 = arith.cmpf ogt, %194, %191 : vector<8x128xf32>
    %213 = arith.select %212, %194, %191 : vector<8x128xi1>, vector<8x128xf32>
    %c3_i32_37 = arith.constant 3 : i32
    %c2_i32_38 = arith.constant 2 : i32
    %214 = vector.broadcast %c3_i32_37 : i32 to vector<8x128xi32>
    %215 = vector.broadcast %c2_i32_38 : i32 to vector<8x128xi32>
    %216 = arith.select %212, %214, %215 : vector<8x128xi1>, vector<8x128xi32>
    %217 = arith.cmpf ogt, %200, %197 : vector<8x128xf32>
    %218 = arith.select %217, %200, %197 : vector<8x128xi1>, vector<8x128xf32>
    %c5_i32_39 = arith.constant 5 : i32
    %c4_i32_40 = arith.constant 4 : i32
    %219 = vector.broadcast %c5_i32_39 : i32 to vector<8x128xi32>
    %220 = vector.broadcast %c4_i32_40 : i32 to vector<8x128xi32>
    %221 = arith.select %217, %219, %220 : vector<8x128xi1>, vector<8x128xi32>
    %222 = arith.cmpf ogt, %206, %203 : vector<8x128xf32>
    %223 = arith.select %222, %206, %203 : vector<8x128xi1>, vector<8x128xf32>
    %c7_i32_41 = arith.constant 7 : i32
    %c6_i32_42 = arith.constant 6 : i32
    %224 = vector.broadcast %c7_i32_41 : i32 to vector<8x128xi32>
    %225 = vector.broadcast %c6_i32_42 : i32 to vector<8x128xi32>
    %226 = arith.select %222, %224, %225 : vector<8x128xi1>, vector<8x128xi32>
    %227 = arith.cmpf ogt, %213, %208 : vector<8x128xf32>
    %228 = arith.select %227, %213, %208 : vector<8x128xi1>, vector<8x128xf32>
    %229 = arith.select %227, %216, %211 : vector<8x128xi1>, vector<8x128xi32>
    %230 = arith.cmpf ogt, %223, %218 : vector<8x128xf32>
    %231 = arith.select %230, %223, %218 : vector<8x128xi1>, vector<8x128xf32>
    %232 = arith.select %230, %226, %221 : vector<8x128xi1>, vector<8x128xi32>
    %233 = arith.cmpf ogt, %231, %228 : vector<8x128xf32>
    %234 = arith.select %233, %231, %228 : vector<8x128xi1>, vector<8x128xf32>
    %235 = arith.select %233, %232, %229 : vector<8x128xi1>, vector<8x128xi32>
    %236 = arith.addf %234, %182 : vector<8x128xf32>
    %237 = vector.broadcast %c3_i32_32 : i32 to vector<1x128xi32>
    %238 = arith.cmpi slt, %237, %2 : vector<1x128xi32>
    %c0_i32_43 = arith.constant 0 : i32
    %239 = vector.shape_cast %238 : vector<1x128xi1> to vector<1x128xi1>
    %240 = vector.broadcast %239 : vector<1x128xi1> to vector<8x128xi1>
    %241 = vector.broadcast %c0_i32_43 : i32 to vector<8x128xi32>
    %242 = arith.select %240, %235, %241 : vector<8x128xi1>, vector<8x128xi32>
    %243 = arith.trunci %242 : vector<8x128xi32> to vector<8x128xi8>
    %244 = vector.shape_cast %243 : vector<8x128xi8> to vector<1x8x128xi8>
    %c1_i32_44 = arith.constant 1 : i32
    %245 = arith.subi %c3_i32_32, %c1_i32_44 : i32
    %246 = arith.index_cast %245 : i32 to index
    %c0_45 = arith.constant 0 : index
    %c0_46 = arith.constant 0 : index
    %247 = vector.load %arg7[%246, %c0_45, %c0_46] : memref<8x8x128xi8, #tpu.memory_space<vmem>>, vector<1x8x128xi8>
    tpu.vector_store %arg7[%246, %c0_45, %c0_46], %244 {strides = array<i32>} : memref<8x8x128xi8, #tpu.memory_space<vmem>>, vector<1x8x128xi8>,
    %c1_i32_47 = arith.constant 1 : i32
    %248 = vector.broadcast %c1_i32_47 : i32 to vector<1x128xi32>
    %249 = arith.subi %2, %248 : vector<1x128xi32>
    %250 = vector.broadcast %c3_i32_32 : i32 to vector<1x128xi32>
    %251 = arith.cmpi eq, %250, %249 : vector<1x128xi32>
    %252 = vector.shape_cast %251 : vector<1x128xi1> to vector<1x128xi1>
    %253 = vector.broadcast %252 : vector<1x128xi1> to vector<8x128xi1>
    %254 = arith.select %253, %236, %179 : vector<8x128xi1>, vector<8x128xf32>
    %c4_i32_48 = arith.constant 4 : i32
    %255 = arith.index_cast %c4_i32_48 : i32 to index
    %c0_49 = arith.constant 0 : index
    %c0_50 = arith.constant 0 : index
    %256 = vector.load %arg1[%255, %c0_49, %c0_50] : memref<8x8x128xf32, #tpu.memory_space<vmem>>, vector<1x8x128xf32>
    %257 = vector.shape_cast %256 : vector<1x8x128xf32> to vector<8x128xf32>
    %258 = vector.extract_strided_slice %236 {offsets = [0, 0], sizes = [1, 128], strides = [1, 1]} : vector<8x128xf32> to vector<1x128xf32>
    %259 = vector.broadcast %258 : vector<1x128xf32> to vector<8x128xf32>
    %260 = arith.addf %259, %5 : vector<8x128xf32>
    %261 = vector.extract_strided_slice %236 {offsets = [1, 0], sizes = [1, 128], strides = [1, 1]} : vector<8x128xf32> to vector<1x128xf32>
    %262 = vector.broadcast %261 : vector<1x128xf32> to vector<8x128xf32>
    %263 = arith.addf %262, %8 : vector<8x128xf32>
    %264 = vector.extract_strided_slice %236 {offsets = [2, 0], sizes = [1, 128], strides = [1, 1]} : vector<8x128xf32> to vector<1x128xf32>
    %265 = vector.broadcast %264 : vector<1x128xf32> to vector<8x128xf32>
    %266 = arith.addf %265, %11 : vector<8x128xf32>
    %267 = vector.extract_strided_slice %236 {offsets = [3, 0], sizes = [1, 128], strides = [1, 1]} : vector<8x128xf32> to vector<1x128xf32>
    %268 = vector.broadcast %267 : vector<1x128xf32> to vector<8x128xf32>
    %269 = arith.addf %268, %14 : vector<8x128xf32>
    %270 = vector.extract_strided_slice %236 {offsets = [4, 0], sizes = [1, 128], strides = [1, 1]} : vector<8x128xf32> to vector<1x128xf32>
    %271 = vector.broadcast %270 : vector<1x128xf32> to vector<8x128xf32>
    %272 = arith.addf %271, %17 : vector<8x128xf32>
    %273 = vector.extract_strided_slice %236 {offsets = [5, 0], sizes = [1, 128], strides = [1, 1]} : vector<8x128xf32> to vector<1x128xf32>
    %274 = vector.broadcast %273 : vector<1x128xf32> to vector<8x128xf32>
    %275 = arith.addf %274, %20 : vector<8x128xf32>
    %276 = vector.extract_strided_slice %236 {offsets = [6, 0], sizes = [1, 128], strides = [1, 1]} : vector<8x128xf32> to vector<1x128xf32>
    %277 = vector.broadcast %276 : vector<1x128xf32> to vector<8x128xf32>
    %278 = arith.addf %277, %23 : vector<8x128xf32>
    %279 = vector.extract_strided_slice %236 {offsets = [7, 0], sizes = [1, 128], strides = [1, 1]} : vector<8x128xf32> to vector<1x128xf32>
    %280 = vector.broadcast %279 : vector<1x128xf32> to vector<8x128xf32>
    %281 = arith.addf %280, %26 : vector<8x128xf32>
    %282 = arith.cmpf ogt, %263, %260 : vector<8x128xf32>
    %283 = arith.select %282, %263, %260 : vector<8x128xi1>, vector<8x128xf32>
    %c1_i32_51 = arith.constant 1 : i32
    %c0_i32_52 = arith.constant 0 : i32
    %284 = vector.broadcast %c1_i32_51 : i32 to vector<8x128xi32>
    %285 = vector.broadcast %c0_i32_52 : i32 to vector<8x128xi32>
    %286 = arith.select %282, %284, %285 : vector<8x128xi1>, vector<8x128xi32>
    %287 = arith.cmpf ogt, %269, %266 : vector<8x128xf32>
    %288 = arith.select %287, %269, %266 : vector<8x128xi1>, vector<8x128xf32>
    %c3_i32_53 = arith.constant 3 : i32
    %c2_i32_54 = arith.constant 2 : i32
    %289 = vector.broadcast %c3_i32_53 : i32 to vector<8x128xi32>
    %290 = vector.broadcast %c2_i32_54 : i32 to vector<8x128xi32>
    %291 = arith.select %287, %289, %290 : vector<8x128xi1>, vector<8x128xi32>
    %292 = arith.cmpf ogt, %275, %272 : vector<8x128xf32>
    %293 = arith.select %292, %275, %272 : vector<8x128xi1>, vector<8x128xf32>
    %c5_i32_55 = arith.constant 5 : i32
    %c4_i32_56 = arith.constant 4 : i32
    %294 = vector.broadcast %c5_i32_55 : i32 to vector<8x128xi32>
    %295 = vector.broadcast %c4_i32_56 : i32 to vector<8x128xi32>
    %296 = arith.select %292, %294, %295 : vector<8x128xi1>, vector<8x128xi32>
    %297 = arith.cmpf ogt, %281, %278 : vector<8x128xf32>
    %298 = arith.select %297, %281, %278 : vector<8x128xi1>, vector<8x128xf32>
    %c7_i32_57 = arith.constant 7 : i32
    %c6_i32_58 = arith.constant 6 : i32
    %299 = vector.broadcast %c7_i32_57 : i32 to vector<8x128xi32>
    %300 = vector.broadcast %c6_i32_58 : i32 to vector<8x128xi32>
    %301 = arith.select %297, %299, %300 : vector<8x128xi1>, vector<8x128xi32>
    %302 = arith.cmpf ogt, %288, %283 : vector<8x128xf32>
    %303 = arith.select %302, %288, %283 : vector<8x128xi1>, vector<8x128xf32>
    %304 = arith.select %302, %291, %286 : vector<8x128xi1>, vector<8x128xi32>
    %305 = arith.cmpf ogt, %298, %293 : vector<8x128xf32>
    %306 = arith.select %305, %298, %293 : vector<8x128xi1>, vector<8x128xf32>
    %307 = arith.select %305, %301, %296 : vector<8x128xi1>, vector<8x128xi32>
    %308 = arith.cmpf ogt, %306, %303 : vector<8x128xf32>
    %309 = arith.select %308, %306, %303 : vector<8x128xi1>, vector<8x128xf32>
    %310 = arith.select %308, %307, %304 : vector<8x128xi1>, vector<8x128xi32>
    %311 = arith.addf %309, %257 : vector<8x128xf32>
    %312 = vector.broadcast %c4_i32_48 : i32 to vector<1x128xi32>
    %313 = arith.cmpi slt, %312, %2 : vector<1x128xi32>
    %c0_i32_59 = arith.constant 0 : i32
    %314 = vector.shape_cast %313 : vector<1x128xi1> to vector<1x128xi1>
    %315 = vector.broadcast %314 : vector<1x128xi1> to vector<8x128xi1>
    %316 = vector.broadcast %c0_i32_59 : i32 to vector<8x128xi32>
    %317 = arith.select %315, %310, %316 : vector<8x128xi1>, vector<8x128xi32>
    %318 = arith.trunci %317 : vector<8x128xi32> to vector<8x128xi8>
    %319 = vector.shape_cast %318 : vector<8x128xi8> to vector<1x8x128xi8>
    %c1_i32_60 = arith.constant 1 : i32
    %320 = arith.subi %c4_i32_48, %c1_i32_60 : i32
    %321 = arith.index_cast %320 : i32 to index
    %c0_61 = arith.constant 0 : index
    %c0_62 = arith.constant 0 : index
    %322 = vector.load %arg7[%321, %c0_61, %c0_62] : memref<8x8x128xi8, #tpu.memory_space<vmem>>, vector<1x8x128xi8>
    tpu.vector_store %arg7[%321, %c0_61, %c0_62], %319 {strides = array<i32>} : memref<8x8x128xi8, #tpu.memory_space<vmem>>, vector<1x8x128xi8>,
    %c1_i32_63 = arith.constant 1 : i32
    %323 = vector.broadcast %c1_i32_63 : i32 to vector<1x128xi32>
    %324 = arith.subi %2, %323 : vector<1x128xi32>
    %325 = vector.broadcast %c4_i32_48 : i32 to vector<1x128xi32>
    %326 = arith.cmpi eq, %325, %324 : vector<1x128xi32>
    %327 = vector.shape_cast %326 : vector<1x128xi1> to vector<1x128xi1>
    %328 = vector.broadcast %327 : vector<1x128xi1> to vector<8x128xi1>
    %329 = arith.select %328, %311, %254 : vector<8x128xi1>, vector<8x128xf32>
    %c5_i32_64 = arith.constant 5 : i32
    %330 = arith.index_cast %c5_i32_64 : i32 to index
    %c0_65 = arith.constant 0 : index
    %c0_66 = arith.constant 0 : index
    %331 = vector.load %arg1[%330, %c0_65, %c0_66] : memref<8x8x128xf32, #tpu.memory_space<vmem>>, vector<1x8x128xf32>
    %332 = vector.shape_cast %331 : vector<1x8x128xf32> to vector<8x128xf32>
    %333 = vector.extract_strided_slice %311 {offsets = [0, 0], sizes = [1, 128], strides = [1, 1]} : vector<8x128xf32> to vector<1x128xf32>
    %334 = vector.broadcast %333 : vector<1x128xf32> to vector<8x128xf32>
    %335 = arith.addf %334, %5 : vector<8x128xf32>
    %336 = vector.extract_strided_slice %311 {offsets = [1, 0], sizes = [1, 128], strides = [1, 1]} : vector<8x128xf32> to vector<1x128xf32>
    %337 = vector.broadcast %336 : vector<1x128xf32> to vector<8x128xf32>
    %338 = arith.addf %337, %8 : vector<8x128xf32>
    %339 = vector.extract_strided_slice %311 {offsets = [2, 0], sizes = [1, 128], strides = [1, 1]} : vector<8x128xf32> to vector<1x128xf32>
    %340 = vector.broadcast %339 : vector<1x128xf32> to vector<8x128xf32>
    %341 = arith.addf %340, %11 : vector<8x128xf32>
    %342 = vector.extract_strided_slice %311 {offsets = [3, 0], sizes = [1, 128], strides = [1, 1]} : vector<8x128xf32> to vector<1x128xf32>
    %343 = vector.broadcast %342 : vector<1x128xf32> to vector<8x128xf32>
    %344 = arith.addf %343, %14 : vector<8x128xf32>
    %345 = vector.extract_strided_slice %311 {offsets = [4, 0], sizes = [1, 128], strides = [1, 1]} : vector<8x128xf32> to vector<1x128xf32>
    %346 = vector.broadcast %345 : vector<1x128xf32> to vector<8x128xf32>
    %347 = arith.addf %346, %17 : vector<8x128xf32>
    %348 = vector.extract_strided_slice %311 {offsets = [5, 0], sizes = [1, 128], strides = [1, 1]} : vector<8x128xf32> to vector<1x128xf32>
    %349 = vector.broadcast %348 : vector<1x128xf32> to vector<8x128xf32>
    %350 = arith.addf %349, %20 : vector<8x128xf32>
    %351 = vector.extract_strided_slice %311 {offsets = [6, 0], sizes = [1, 128], strides = [1, 1]} : vector<8x128xf32> to vector<1x128xf32>
    %352 = vector.broadcast %351 : vector<1x128xf32> to vector<8x128xf32>
    %353 = arith.addf %352, %23 : vector<8x128xf32>
    %354 = vector.extract_strided_slice %311 {offsets = [7, 0], sizes = [1, 128], strides = [1, 1]} : vector<8x128xf32> to vector<1x128xf32>
    %355 = vector.broadcast %354 : vector<1x128xf32> to vector<8x128xf32>
    %356 = arith.addf %355, %26 : vector<8x128xf32>
    %357 = arith.cmpf ogt, %338, %335 : vector<8x128xf32>
    %358 = arith.select %357, %338, %335 : vector<8x128xi1>, vector<8x128xf32>
    %c1_i32_67 = arith.constant 1 : i32
    %c0_i32_68 = arith.constant 0 : i32
    %359 = vector.broadcast %c1_i32_67 : i32 to vector<8x128xi32>
    %360 = vector.broadcast %c0_i32_68 : i32 to vector<8x128xi32>
    %361 = arith.select %357, %359, %360 : vector<8x128xi1>, vector<8x128xi32>
    %362 = arith.cmpf ogt, %344, %341 : vector<8x128xf32>
    %363 = arith.select %362, %344, %341 : vector<8x128xi1>, vector<8x128xf32>
    %c3_i32_69 = arith.constant 3 : i32
    %c2_i32_70 = arith.constant 2 : i32
    %364 = vector.broadcast %c3_i32_69 : i32 to vector<8x128xi32>
    %365 = vector.broadcast %c2_i32_70 : i32 to vector<8x128xi32>
    %366 = arith.select %362, %364, %365 : vector<8x128xi1>, vector<8x128xi32>
    %367 = arith.cmpf ogt, %350, %347 : vector<8x128xf32>
    %368 = arith.select %367, %350, %347 : vector<8x128xi1>, vector<8x128xf32>
    %c5_i32_71 = arith.constant 5 : i32
    %c4_i32_72 = arith.constant 4 : i32
    %369 = vector.broadcast %c5_i32_71 : i32 to vector<8x128xi32>
    %370 = vector.broadcast %c4_i32_72 : i32 to vector<8x128xi32>
    %371 = arith.select %367, %369, %370 : vector<8x128xi1>, vector<8x128xi32>
    %372 = arith.cmpf ogt, %356, %353 : vector<8x128xf32>
    %373 = arith.select %372, %356, %353 : vector<8x128xi1>, vector<8x128xf32>
    %c7_i32_73 = arith.constant 7 : i32
    %c6_i32_74 = arith.constant 6 : i32
    %374 = vector.broadcast %c7_i32_73 : i32 to vector<8x128xi32>
    %375 = vector.broadcast %c6_i32_74 : i32 to vector<8x128xi32>
    %376 = arith.select %372, %374, %375 : vector<8x128xi1>, vector<8x128xi32>
    %377 = arith.cmpf ogt, %363, %358 : vector<8x128xf32>
    %378 = arith.select %377, %363, %358 : vector<8x128xi1>, vector<8x128xf32>
    %379 = arith.select %377, %366, %361 : vector<8x128xi1>, vector<8x128xi32>
    %380 = arith.cmpf ogt, %373, %368 : vector<8x128xf32>
    %381 = arith.select %380, %373, %368 : vector<8x128xi1>, vector<8x128xf32>
    %382 = arith.select %380, %376, %371 : vector<8x128xi1>, vector<8x128xi32>
    %383 = arith.cmpf ogt, %381, %378 : vector<8x128xf32>
    %384 = arith.select %383, %381, %378 : vector<8x128xi1>, vector<8x128xf32>
    %385 = arith.select %383, %382, %379 : vector<8x128xi1>, vector<8x128xi32>
    %386 = arith.addf %384, %332 : vector<8x128xf32>
    %387 = vector.broadcast %c5_i32_64 : i32 to vector<1x128xi32>
    %388 = arith.cmpi slt, %387, %2 : vector<1x128xi32>
    %c0_i32_75 = arith.constant 0 : i32
    %389 = vector.shape_cast %388 : vector<1x128xi1> to vector<1x128xi1>
    %390 = vector.broadcast %389 : vector<1x128xi1> to vector<8x128xi1>
    %391 = vector.broadcast %c0_i32_75 : i32 to vector<8x128xi32>
    %392 = arith.select %390, %385, %391 : vector<8x128xi1>, vector<8x128xi32>
    %393 = arith.trunci %392 : vector<8x128xi32> to vector<8x128xi8>
    %394 = vector.shape_cast %393 : vector<8x128xi8> to vector<1x8x128xi8>
    %c1_i32_76 = arith.constant 1 : i32
    %395 = arith.subi %c5_i32_64, %c1_i32_76 : i32
    %396 = arith.index_cast %395 : i32 to index
    %c0_77 = arith.constant 0 : index
    %c0_78 = arith.constant 0 : index
    %397 = vector.load %arg7[%396, %c0_77, %c0_78] : memref<8x8x128xi8, #tpu.memory_space<vmem>>, vector<1x8x128xi8>
    tpu.vector_store %arg7[%396, %c0_77, %c0_78], %394 {strides = array<i32>} : memref<8x8x128xi8, #tpu.memory_space<vmem>>, vector<1x8x128xi8>,
    %c1_i32_79 = arith.constant 1 : i32
    %398 = vector.broadcast %c1_i32_79 : i32 to vector<1x128xi32>
    %399 = arith.subi %2, %398 : vector<1x128xi32>
    %400 = vector.broadcast %c5_i32_64 : i32 to vector<1x128xi32>
    %401 = arith.cmpi eq, %400, %399 : vector<1x128xi32>
    %402 = vector.shape_cast %401 : vector<1x128xi1> to vector<1x128xi1>
    %403 = vector.broadcast %402 : vector<1x128xi1> to vector<8x128xi1>
    %404 = arith.select %403, %386, %329 : vector<8x128xi1>, vector<8x128xf32>
    %c6_i32_80 = arith.constant 6 : i32
    %405 = arith.index_cast %c6_i32_80 : i32 to index
    %c0_81 = arith.constant 0 : index
    %c0_82 = arith.constant 0 : index
    %406 = vector.load %arg1[%405, %c0_81, %c0_82] : memref<8x8x128xf32, #tpu.memory_space<vmem>>, vector<1x8x128xf32>
    %407 = vector.shape_cast %406 : vector<1x8x128xf32> to vector<8x128xf32>
    %408 = vector.extract_strided_slice %386 {offsets = [0, 0], sizes = [1, 128], strides = [1, 1]} : vector<8x128xf32> to vector<1x128xf32>
    %409 = vector.broadcast %408 : vector<1x128xf32> to vector<8x128xf32>
    %410 = arith.addf %409, %5 : vector<8x128xf32>
    %411 = vector.extract_strided_slice %386 {offsets = [1, 0], sizes = [1, 128], strides = [1, 1]} : vector<8x128xf32> to vector<1x128xf32>
    %412 = vector.broadcast %411 : vector<1x128xf32> to vector<8x128xf32>
    %413 = arith.addf %412, %8 : vector<8x128xf32>
    %414 = vector.extract_strided_slice %386 {offsets = [2, 0], sizes = [1, 128], strides = [1, 1]} : vector<8x128xf32> to vector<1x128xf32>
    %415 = vector.broadcast %414 : vector<1x128xf32> to vector<8x128xf32>
    %416 = arith.addf %415, %11 : vector<8x128xf32>
    %417 = vector.extract_strided_slice %386 {offsets = [3, 0], sizes = [1, 128], strides = [1, 1]} : vector<8x128xf32> to vector<1x128xf32>
    %418 = vector.broadcast %417 : vector<1x128xf32> to vector<8x128xf32>
    %419 = arith.addf %418, %14 : vector<8x128xf32>
    %420 = vector.extract_strided_slice %386 {offsets = [4, 0], sizes = [1, 128], strides = [1, 1]} : vector<8x128xf32> to vector<1x128xf32>
    %421 = vector.broadcast %420 : vector<1x128xf32> to vector<8x128xf32>
    %422 = arith.addf %421, %17 : vector<8x128xf32>
    %423 = vector.extract_strided_slice %386 {offsets = [5, 0], sizes = [1, 128], strides = [1, 1]} : vector<8x128xf32> to vector<1x128xf32>
    %424 = vector.broadcast %423 : vector<1x128xf32> to vector<8x128xf32>
    %425 = arith.addf %424, %20 : vector<8x128xf32>
    %426 = vector.extract_strided_slice %386 {offsets = [6, 0], sizes = [1, 128], strides = [1, 1]} : vector<8x128xf32> to vector<1x128xf32>
    %427 = vector.broadcast %426 : vector<1x128xf32> to vector<8x128xf32>
    %428 = arith.addf %427, %23 : vector<8x128xf32>
    %429 = vector.extract_strided_slice %386 {offsets = [7, 0], sizes = [1, 128], strides = [1, 1]} : vector<8x128xf32> to vector<1x128xf32>
    %430 = vector.broadcast %429 : vector<1x128xf32> to vector<8x128xf32>
    %431 = arith.addf %430, %26 : vector<8x128xf32>
    %432 = arith.cmpf ogt, %413, %410 : vector<8x128xf32>
    %433 = arith.select %432, %413, %410 : vector<8x128xi1>, vector<8x128xf32>
    %c1_i32_83 = arith.constant 1 : i32
    %c0_i32_84 = arith.constant 0 : i32
    %434 = vector.broadcast %c1_i32_83 : i32 to vector<8x128xi32>
    %435 = vector.broadcast %c0_i32_84 : i32 to vector<8x128xi32>
    %436 = arith.select %432, %434, %435 : vector<8x128xi1>, vector<8x128xi32>
    %437 = arith.cmpf ogt, %419, %416 : vector<8x128xf32>
    %438 = arith.select %437, %419, %416 : vector<8x128xi1>, vector<8x128xf32>
    %c3_i32_85 = arith.constant 3 : i32
    %c2_i32_86 = arith.constant 2 : i32
    %439 = vector.broadcast %c3_i32_85 : i32 to vector<8x128xi32>
    %440 = vector.broadcast %c2_i32_86 : i32 to vector<8x128xi32>
    %441 = arith.select %437, %439, %440 : vector<8x128xi1>, vector<8x128xi32>
    %442 = arith.cmpf ogt, %425, %422 : vector<8x128xf32>
    %443 = arith.select %442, %425, %422 : vector<8x128xi1>, vector<8x128xf32>
    %c5_i32_87 = arith.constant 5 : i32
    %c4_i32_88 = arith.constant 4 : i32
    %444 = vector.broadcast %c5_i32_87 : i32 to vector<8x128xi32>
    %445 = vector.broadcast %c4_i32_88 : i32 to vector<8x128xi32>
    %446 = arith.select %442, %444, %445 : vector<8x128xi1>, vector<8x128xi32>
    %447 = arith.cmpf ogt, %431, %428 : vector<8x128xf32>
    %448 = arith.select %447, %431, %428 : vector<8x128xi1>, vector<8x128xf32>
    %c7_i32_89 = arith.constant 7 : i32
    %c6_i32_90 = arith.constant 6 : i32
    %449 = vector.broadcast %c7_i32_89 : i32 to vector<8x128xi32>
    %450 = vector.broadcast %c6_i32_90 : i32 to vector<8x128xi32>
    %451 = arith.select %447, %449, %450 : vector<8x128xi1>, vector<8x128xi32>
    %452 = arith.cmpf ogt, %438, %433 : vector<8x128xf32>
    %453 = arith.select %452, %438, %433 : vector<8x128xi1>, vector<8x128xf32>
    %454 = arith.select %452, %441, %436 : vector<8x128xi1>, vector<8x128xi32>
    %455 = arith.cmpf ogt, %448, %443 : vector<8x128xf32>
    %456 = arith.select %455, %448, %443 : vector<8x128xi1>, vector<8x128xf32>
    %457 = arith.select %455, %451, %446 : vector<8x128xi1>, vector<8x128xi32>
    %458 = arith.cmpf ogt, %456, %453 : vector<8x128xf32>
    %459 = arith.select %458, %456, %453 : vector<8x128xi1>, vector<8x128xf32>
    %460 = arith.select %458, %457, %454 : vector<8x128xi1>, vector<8x128xi32>
    %461 = arith.addf %459, %407 : vector<8x128xf32>
    %462 = vector.broadcast %c6_i32_80 : i32 to vector<1x128xi32>
    %463 = arith.cmpi slt, %462, %2 : vector<1x128xi32>
    %c0_i32_91 = arith.constant 0 : i32
    %464 = vector.shape_cast %463 : vector<1x128xi1> to vector<1x128xi1>
    %465 = vector.broadcast %464 : vector<1x128xi1> to vector<8x128xi1>
    %466 = vector.broadcast %c0_i32_91 : i32 to vector<8x128xi32>
    %467 = arith.select %465, %460, %466 : vector<8x128xi1>, vector<8x128xi32>
    %468 = arith.trunci %467 : vector<8x128xi32> to vector<8x128xi8>
    %469 = vector.shape_cast %468 : vector<8x128xi8> to vector<1x8x128xi8>
    %c1_i32_92 = arith.constant 1 : i32
    %470 = arith.subi %c6_i32_80, %c1_i32_92 : i32
    %471 = arith.index_cast %470 : i32 to index
    %c0_93 = arith.constant 0 : index
    %c0_94 = arith.constant 0 : index
    %472 = vector.load %arg7[%471, %c0_93, %c0_94] : memref<8x8x128xi8, #tpu.memory_space<vmem>>, vector<1x8x128xi8>
    tpu.vector_store %arg7[%471, %c0_93, %c0_94], %469 {strides = array<i32>} : memref<8x8x128xi8, #tpu.memory_space<vmem>>, vector<1x8x128xi8>,
    %c1_i32_95 = arith.constant 1 : i32
    %473 = vector.broadcast %c1_i32_95 : i32 to vector<1x128xi32>
    %474 = arith.subi %2, %473 : vector<1x128xi32>
    %475 = vector.broadcast %c6_i32_80 : i32 to vector<1x128xi32>
    %476 = arith.cmpi eq, %475, %474 : vector<1x128xi32>
    %477 = vector.shape_cast %476 : vector<1x128xi1> to vector<1x128xi1>
    %478 = vector.broadcast %477 : vector<1x128xi1> to vector<8x128xi1>
    %479 = arith.select %478, %461, %404 : vector<8x128xi1>, vector<8x128xf32>
    %c7_i32_96 = arith.constant 7 : i32
    %480 = arith.index_cast %c7_i32_96 : i32 to index
    %c0_97 = arith.constant 0 : index
    %c0_98 = arith.constant 0 : index
    %481 = vector.load %arg1[%480, %c0_97, %c0_98] : memref<8x8x128xf32, #tpu.memory_space<vmem>>, vector<1x8x128xf32>
    %482 = vector.shape_cast %481 : vector<1x8x128xf32> to vector<8x128xf32>
    %483 = vector.extract_strided_slice %461 {offsets = [0, 0], sizes = [1, 128], strides = [1, 1]} : vector<8x128xf32> to vector<1x128xf32>
    %484 = vector.broadcast %483 : vector<1x128xf32> to vector<8x128xf32>
    %485 = arith.addf %484, %5 : vector<8x128xf32>
    %486 = vector.extract_strided_slice %461 {offsets = [1, 0], sizes = [1, 128], strides = [1, 1]} : vector<8x128xf32> to vector<1x128xf32>
    %487 = vector.broadcast %486 : vector<1x128xf32> to vector<8x128xf32>
    %488 = arith.addf %487, %8 : vector<8x128xf32>
    %489 = vector.extract_strided_slice %461 {offsets = [2, 0], sizes = [1, 128], strides = [1, 1]} : vector<8x128xf32> to vector<1x128xf32>
    %490 = vector.broadcast %489 : vector<1x128xf32> to vector<8x128xf32>
    %491 = arith.addf %490, %11 : vector<8x128xf32>
    %492 = vector.extract_strided_slice %461 {offsets = [3, 0], sizes = [1, 128], strides = [1, 1]} : vector<8x128xf32> to vector<1x128xf32>
    %493 = vector.broadcast %492 : vector<1x128xf32> to vector<8x128xf32>
    %494 = arith.addf %493, %14 : vector<8x128xf32>
    %495 = vector.extract_strided_slice %461 {offsets = [4, 0], sizes = [1, 128], strides = [1, 1]} : vector<8x128xf32> to vector<1x128xf32>
    %496 = vector.broadcast %495 : vector<1x128xf32> to vector<8x128xf32>
    %497 = arith.addf %496, %17 : vector<8x128xf32>
    %498 = vector.extract_strided_slice %461 {offsets = [5, 0], sizes = [1, 128], strides = [1, 1]} : vector<8x128xf32> to vector<1x128xf32>
    %499 = vector.broadcast %498 : vector<1x128xf32> to vector<8x128xf32>
    %500 = arith.addf %499, %20 : vector<8x128xf32>
    %501 = vector.extract_strided_slice %461 {offsets = [6, 0], sizes = [1, 128], strides = [1, 1]} : vector<8x128xf32> to vector<1x128xf32>
    %502 = vector.broadcast %501 : vector<1x128xf32> to vector<8x128xf32>
    %503 = arith.addf %502, %23 : vector<8x128xf32>
    %504 = vector.extract_strided_slice %461 {offsets = [7, 0], sizes = [1, 128], strides = [1, 1]} : vector<8x128xf32> to vector<1x128xf32>
    %505 = vector.broadcast %504 : vector<1x128xf32> to vector<8x128xf32>
    %506 = arith.addf %505, %26 : vector<8x128xf32>
    %507 = arith.cmpf ogt, %488, %485 : vector<8x128xf32>
    %508 = arith.select %507, %488, %485 : vector<8x128xi1>, vector<8x128xf32>
    %c1_i32_99 = arith.constant 1 : i32
    %c0_i32_100 = arith.constant 0 : i32
    %509 = vector.broadcast %c1_i32_99 : i32 to vector<8x128xi32>
    %510 = vector.broadcast %c0_i32_100 : i32 to vector<8x128xi32>
    %511 = arith.select %507, %509, %510 : vector<8x128xi1>, vector<8x128xi32>
    %512 = arith.cmpf ogt, %494, %491 : vector<8x128xf32>
    %513 = arith.select %512, %494, %491 : vector<8x128xi1>, vector<8x128xf32>
    %c3_i32_101 = arith.constant 3 : i32
    %c2_i32_102 = arith.constant 2 : i32
    %514 = vector.broadcast %c3_i32_101 : i32 to vector<8x128xi32>
    %515 = vector.broadcast %c2_i32_102 : i32 to vector<8x128xi32>
    %516 = arith.select %512, %514, %515 : vector<8x128xi1>, vector<8x128xi32>
    %517 = arith.cmpf ogt, %500, %497 : vector<8x128xf32>
    %518 = arith.select %517, %500, %497 : vector<8x128xi1>, vector<8x128xf32>
    %c5_i32_103 = arith.constant 5 : i32
    %c4_i32_104 = arith.constant 4 : i32
    %519 = vector.broadcast %c5_i32_103 : i32 to vector<8x128xi32>
    %520 = vector.broadcast %c4_i32_104 : i32 to vector<8x128xi32>
    %521 = arith.select %517, %519, %520 : vector<8x128xi1>, vector<8x128xi32>
    %522 = arith.cmpf ogt, %506, %503 : vector<8x128xf32>
    %523 = arith.select %522, %506, %503 : vector<8x128xi1>, vector<8x128xf32>
    %c7_i32_105 = arith.constant 7 : i32
    %c6_i32_106 = arith.constant 6 : i32
    %524 = vector.broadcast %c7_i32_105 : i32 to vector<8x128xi32>
    %525 = vector.broadcast %c6_i32_106 : i32 to vector<8x128xi32>
    %526 = arith.select %522, %524, %525 : vector<8x128xi1>, vector<8x128xi32>
    %527 = arith.cmpf ogt, %513, %508 : vector<8x128xf32>
    %528 = arith.select %527, %513, %508 : vector<8x128xi1>, vector<8x128xf32>
    %529 = arith.select %527, %516, %511 : vector<8x128xi1>, vector<8x128xi32>
    %530 = arith.cmpf ogt, %523, %518 : vector<8x128xf32>
    %531 = arith.select %530, %523, %518 : vector<8x128xi1>, vector<8x128xf32>
    %532 = arith.select %530, %526, %521 : vector<8x128xi1>, vector<8x128xi32>
    %533 = arith.cmpf ogt, %531, %528 : vector<8x128xf32>
    %534 = arith.select %533, %531, %528 : vector<8x128xi1>, vector<8x128xf32>
    %535 = arith.select %533, %532, %529 : vector<8x128xi1>, vector<8x128xi32>
    %536 = arith.addf %534, %482 : vector<8x128xf32>
    %537 = vector.broadcast %c7_i32_96 : i32 to vector<1x128xi32>
    %538 = arith.cmpi slt, %537, %2 : vector<1x128xi32>
    %c0_i32_107 = arith.constant 0 : i32
    %539 = vector.shape_cast %538 : vector<1x128xi1> to vector<1x128xi1>
    %540 = vector.broadcast %539 : vector<1x128xi1> to vector<8x128xi1>
    %541 = vector.broadcast %c0_i32_107 : i32 to vector<8x128xi32>
    %542 = arith.select %540, %535, %541 : vector<8x128xi1>, vector<8x128xi32>
    %543 = arith.trunci %542 : vector<8x128xi32> to vector<8x128xi8>
    %544 = vector.shape_cast %543 : vector<8x128xi8> to vector<1x8x128xi8>
    %c1_i32_108 = arith.constant 1 : i32
    %545 = arith.subi %c7_i32_96, %c1_i32_108 : i32
    %546 = arith.index_cast %545 : i32 to index
    %c0_109 = arith.constant 0 : index
    %c0_110 = arith.constant 0 : index
    %547 = vector.load %arg7[%546, %c0_109, %c0_110] : memref<8x8x128xi8, #tpu.memory_space<vmem>>, vector<1x8x128xi8>
    tpu.vector_store %arg7[%546, %c0_109, %c0_110], %544 {strides = array<i32>} : memref<8x8x128xi8, #tpu.memory_space<vmem>>, vector<1x8x128xi8>,
    %c1_i32_111 = arith.constant 1 : i32
    %548 = vector.broadcast %c1_i32_111 : i32 to vector<1x128xi32>
    %549 = arith.subi %2, %548 : vector<1x128xi32>
    %550 = vector.broadcast %c7_i32_96 : i32 to vector<1x128xi32>
    %551 = arith.cmpi eq, %550, %549 : vector<1x128xi32>
    %552 = vector.shape_cast %551 : vector<1x128xi1> to vector<1x128xi1>
    %553 = vector.broadcast %552 : vector<1x128xi1> to vector<8x128xi1>
    %554 = arith.select %553, %536, %479 : vector<8x128xi1>, vector<8x128xf32>
    %c7_i32_112 = arith.constant 7 : i32
    %555 = vector.extract_strided_slice %0 {offsets = [0, 7], sizes = [8, 1], strides = [1, 1]} : vector<8x8xf32> to vector<8x1xf32>
    %556 = vector.broadcast %555 : vector<8x1xf32> to vector<8x128xf32>
    %557 = arith.addf %554, %556 : vector<8x128xf32>
    %558 = vector.extract_strided_slice %557 {offsets = [0, 0], sizes = [1, 128], strides = [1, 1]} : vector<8x128xf32> to vector<1x128xf32>
    %559 = vector.extract_strided_slice %557 {offsets = [1, 0], sizes = [1, 128], strides = [1, 1]} : vector<8x128xf32> to vector<1x128xf32>
    %560 = vector.extract_strided_slice %557 {offsets = [2, 0], sizes = [1, 128], strides = [1, 1]} : vector<8x128xf32> to vector<1x128xf32>
    %561 = vector.extract_strided_slice %557 {offsets = [3, 0], sizes = [1, 128], strides = [1, 1]} : vector<8x128xf32> to vector<1x128xf32>
    %562 = vector.extract_strided_slice %557 {offsets = [4, 0], sizes = [1, 128], strides = [1, 1]} : vector<8x128xf32> to vector<1x128xf32>
    %563 = vector.extract_strided_slice %557 {offsets = [5, 0], sizes = [1, 128], strides = [1, 1]} : vector<8x128xf32> to vector<1x128xf32>
    %564 = vector.extract_strided_slice %557 {offsets = [6, 0], sizes = [1, 128], strides = [1, 1]} : vector<8x128xf32> to vector<1x128xf32>
    %565 = vector.extract_strided_slice %557 {offsets = [7, 0], sizes = [1, 128], strides = [1, 1]} : vector<8x128xf32> to vector<1x128xf32>
    %566 = arith.cmpf ogt, %559, %558 : vector<1x128xf32>
    %567 = arith.select %566, %559, %558 : vector<1x128xi1>, vector<1x128xf32>
    %c1_i32_113 = arith.constant 1 : i32
    %c0_i32_114 = arith.constant 0 : i32
    %568 = vector.broadcast %c1_i32_113 : i32 to vector<1x128xi32>
    %569 = vector.broadcast %c0_i32_114 : i32 to vector<1x128xi32>
    %570 = arith.select %566, %568, %569 : vector<1x128xi1>, vector<1x128xi32>
    %571 = arith.cmpf ogt, %561, %560 : vector<1x128xf32>
    %572 = arith.select %571, %561, %560 : vector<1x128xi1>, vector<1x128xf32>
    %c3_i32_115 = arith.constant 3 : i32
    %c2_i32_116 = arith.constant 2 : i32
    %573 = vector.broadcast %c3_i32_115 : i32 to vector<1x128xi32>
    %574 = vector.broadcast %c2_i32_116 : i32 to vector<1x128xi32>
    %575 = arith.select %571, %573, %574 : vector<1x128xi1>, vector<1x128xi32>
    %576 = arith.cmpf ogt, %563, %562 : vector<1x128xf32>
    %577 = arith.select %576, %563, %562 : vector<1x128xi1>, vector<1x128xf32>
    %c5_i32_117 = arith.constant 5 : i32
    %c4_i32_118 = arith.constant 4 : i32
    %578 = vector.broadcast %c5_i32_117 : i32 to vector<1x128xi32>
    %579 = vector.broadcast %c4_i32_118 : i32 to vector<1x128xi32>
    %580 = arith.select %576, %578, %579 : vector<1x128xi1>, vector<1x128xi32>
    %581 = arith.cmpf ogt, %565, %564 : vector<1x128xf32>
    %582 = arith.select %581, %565, %564 : vector<1x128xi1>, vector<1x128xf32>
    %c7_i32_119 = arith.constant 7 : i32
    %c6_i32_120 = arith.constant 6 : i32
    %583 = vector.broadcast %c7_i32_119 : i32 to vector<1x128xi32>
    %584 = vector.broadcast %c6_i32_120 : i32 to vector<1x128xi32>
    %585 = arith.select %581, %583, %584 : vector<1x128xi1>, vector<1x128xi32>
    %586 = arith.cmpf ogt, %572, %567 : vector<1x128xf32>
    %587 = arith.select %586, %572, %567 : vector<1x128xi1>, vector<1x128xf32>
    %588 = arith.select %586, %575, %570 : vector<1x128xi1>, vector<1x128xi32>
    %589 = arith.cmpf ogt, %582, %577 : vector<1x128xf32>
    %590 = arith.select %589, %582, %577 : vector<1x128xi1>, vector<1x128xf32>
    %591 = arith.select %589, %585, %580 : vector<1x128xi1>, vector<1x128xi32>
    %592 = arith.cmpf ogt, %590, %587 : vector<1x128xf32>
    %593 = arith.select %592, %590, %587 : vector<1x128xi1>, vector<1x128xf32>
    %594 = arith.select %592, %591, %588 : vector<1x128xi1>, vector<1x128xi32>
    %c0_121 = arith.constant 0 : index
    %c0_122 = arith.constant 0 : index
    %595 = vector.load %arg6[%c0_121, %c0_122] : memref<1x128xf32, #tpu.memory_space<vmem>>, vector<1x128xf32>
    tpu.vector_store %arg6[%c0_121, %c0_122], %593 {strides = array<i32>} : memref<1x128xf32, #tpu.memory_space<vmem>>, vector<1x128xf32>,
    %c7 = arith.constant 7 : index
    %c0_123 = arith.constant 0 : index
    %596 = vector.load %arg5[%c7, %c0_123] : memref<8x128xi32, #tpu.memory_space<vmem>>, vector<1x128xi32>
    tpu.vector_store %arg5[%c7, %c0_123], %594 {strides = array<i32>} : memref<8x128xi32, #tpu.memory_space<vmem>>, vector<1x128xi32>,
    %597 = tpu.iota {dimensions = array<i32: 0>} : vector<8x128xi32>
    %c0_i32_124 = arith.constant 0 : i32
    %c6_i32_125 = arith.constant 6 : i32
    %598 = arith.subi %c6_i32_125, %c0_i32_124 : i32
    %599 = arith.index_cast %598 : i32 to index
    %c0_126 = arith.constant 0 : index
    %c0_127 = arith.constant 0 : index
    %600 = vector.load %arg7[%599, %c0_126, %c0_127] : memref<8x8x128xi8, #tpu.memory_space<vmem>>, vector<1x8x128xi8>
    %601 = vector.shape_cast %600 : vector<1x8x128xi8> to vector<8x128xi8>
    %602 = arith.extsi %601 : vector<8x128xi8> to vector<8x128xi32>
    %603 = vector.broadcast %594 : vector<1x128xi32> to vector<8x128xi32>
    %604 = arith.cmpi eq, %597, %603 : vector<8x128xi32>
    %c0_i32_128 = arith.constant 0 : i32
    %605 = vector.broadcast %c0_i32_128 : i32 to vector<8x128xi32>
    %606 = arith.select %604, %602, %605 : vector<8x128xi1>, vector<8x128xi32>
    %cst = arith.constant dense<0> : vector<128xi32>
    %607 = vector.multi_reduction <add>, %606, %cst [0] : vector<8x128xi32> to vector<128xi32>
    %608 = vector.shape_cast %607 : vector<128xi32> to vector<1x128xi32>
    %c1_i32_129 = arith.constant 1 : i32
    %609 = vector.broadcast %c1_i32_129 : i32 to vector<1x128xi32>
    %610 = arith.subi %2, %609 : vector<1x128xi32>
    %611 = vector.broadcast %598 : i32 to vector<1x128xi32>
    %612 = arith.cmpi eq, %611, %610 : vector<1x128xi32>
    %613 = arith.select %612, %594, %608 : vector<1x128xi1>, vector<1x128xi32>
    %614 = arith.index_cast %598 : i32 to index
    %c0_130 = arith.constant 0 : index
    %615 = vector.load %arg5[%614, %c0_130] : memref<8x128xi32, #tpu.memory_space<vmem>>, vector<1x128xi32>
    tpu.vector_store %arg5[%614, %c0_130], %613 {strides = array<i32>} : memref<8x128xi32, #tpu.memory_space<vmem>>, vector<1x128xi32>,
    %c1_i32_131 = arith.constant 1 : i32
    %c6_i32_132 = arith.constant 6 : i32
    %616 = arith.subi %c6_i32_132, %c1_i32_131 : i32
    %617 = arith.index_cast %616 : i32 to index
    %c0_133 = arith.constant 0 : index
    %c0_134 = arith.constant 0 : index
    %618 = vector.load %arg7[%617, %c0_133, %c0_134] : memref<8x8x128xi8, #tpu.memory_space<vmem>>, vector<1x8x128xi8>
    %619 = vector.shape_cast %618 : vector<1x8x128xi8> to vector<8x128xi8>
    %620 = arith.extsi %619 : vector<8x128xi8> to vector<8x128xi32>
    %621 = vector.broadcast %613 : vector<1x128xi32> to vector<8x128xi32>
    %622 = arith.cmpi eq, %597, %621 : vector<8x128xi32>
    %c0_i32_135 = arith.constant 0 : i32
    %623 = vector.broadcast %c0_i32_135 : i32 to vector<8x128xi32>
    %624 = arith.select %622, %620, %623 : vector<8x128xi1>, vector<8x128xi32>
    %cst_136 = arith.constant dense<0> : vector<128xi32>
    %625 = vector.multi_reduction <add>, %624, %cst_136 [0] : vector<8x128xi32> to vector<128xi32>
    %626 = vector.shape_cast %625 : vector<128xi32> to vector<1x128xi32>
    %c1_i32_137 = arith.constant 1 : i32
    %627 = vector.broadcast %c1_i32_137 : i32 to vector<1x128xi32>
    %628 = arith.subi %2, %627 : vector<1x128xi32>
    %629 = vector.broadcast %616 : i32 to vector<1x128xi32>
    %630 = arith.cmpi eq, %629, %628 : vector<1x128xi32>
    %631 = arith.select %630, %594, %626 : vector<1x128xi1>, vector<1x128xi32>
    %632 = arith.index_cast %616 : i32 to index
    %c0_138 = arith.constant 0 : index
    %633 = vector.load %arg5[%632, %c0_138] : memref<8x128xi32, #tpu.memory_space<vmem>>, vector<1x128xi32>
    tpu.vector_store %arg5[%632, %c0_138], %631 {strides = array<i32>} : memref<8x128xi32, #tpu.memory_space<vmem>>, vector<1x128xi32>,
    %c2_i32_139 = arith.constant 2 : i32
    %c6_i32_140 = arith.constant 6 : i32
    %634 = arith.subi %c6_i32_140, %c2_i32_139 : i32
    %635 = arith.index_cast %634 : i32 to index
    %c0_141 = arith.constant 0 : index
    %c0_142 = arith.constant 0 : index
    %636 = vector.load %arg7[%635, %c0_141, %c0_142] : memref<8x8x128xi8, #tpu.memory_space<vmem>>, vector<1x8x128xi8>
    %637 = vector.shape_cast %636 : vector<1x8x128xi8> to vector<8x128xi8>
    %638 = arith.extsi %637 : vector<8x128xi8> to vector<8x128xi32>
    %639 = vector.broadcast %631 : vector<1x128xi32> to vector<8x128xi32>
    %640 = arith.cmpi eq, %597, %639 : vector<8x128xi32>
    %c0_i32_143 = arith.constant 0 : i32
    %641 = vector.broadcast %c0_i32_143 : i32 to vector<8x128xi32>
    %642 = arith.select %640, %638, %641 : vector<8x128xi1>, vector<8x128xi32>
    %cst_144 = arith.constant dense<0> : vector<128xi32>
    %643 = vector.multi_reduction <add>, %642, %cst_144 [0] : vector<8x128xi32> to vector<128xi32>
    %644 = vector.shape_cast %643 : vector<128xi32> to vector<1x128xi32>
    %c1_i32_145 = arith.constant 1 : i32
    %645 = vector.broadcast %c1_i32_145 : i32 to vector<1x128xi32>
    %646 = arith.subi %2, %645 : vector<1x128xi32>
    %647 = vector.broadcast %634 : i32 to vector<1x128xi32>
    %648 = arith.cmpi eq, %647, %646 : vector<1x128xi32>
    %649 = arith.select %648, %594, %644 : vector<1x128xi1>, vector<1x128xi32>
    %650 = arith.index_cast %634 : i32 to index
    %c0_146 = arith.constant 0 : index
    %651 = vector.load %arg5[%650, %c0_146] : memref<8x128xi32, #tpu.memory_space<vmem>>, vector<1x128xi32>
    tpu.vector_store %arg5[%650, %c0_146], %649 {strides = array<i32>} : memref<8x128xi32, #tpu.memory_space<vmem>>, vector<1x128xi32>,
    %c3_i32_147 = arith.constant 3 : i32
    %c6_i32_148 = arith.constant 6 : i32
    %652 = arith.subi %c6_i32_148, %c3_i32_147 : i32
    %653 = arith.index_cast %652 : i32 to index
    %c0_149 = arith.constant 0 : index
    %c0_150 = arith.constant 0 : index
    %654 = vector.load %arg7[%653, %c0_149, %c0_150] : memref<8x8x128xi8, #tpu.memory_space<vmem>>, vector<1x8x128xi8>
    %655 = vector.shape_cast %654 : vector<1x8x128xi8> to vector<8x128xi8>
    %656 = arith.extsi %655 : vector<8x128xi8> to vector<8x128xi32>
    %657 = vector.broadcast %649 : vector<1x128xi32> to vector<8x128xi32>
    %658 = arith.cmpi eq, %597, %657 : vector<8x128xi32>
    %c0_i32_151 = arith.constant 0 : i32
    %659 = vector.broadcast %c0_i32_151 : i32 to vector<8x128xi32>
    %660 = arith.select %658, %656, %659 : vector<8x128xi1>, vector<8x128xi32>
    %cst_152 = arith.constant dense<0> : vector<128xi32>
    %661 = vector.multi_reduction <add>, %660, %cst_152 [0] : vector<8x128xi32> to vector<128xi32>
    %662 = vector.shape_cast %661 : vector<128xi32> to vector<1x128xi32>
    %c1_i32_153 = arith.constant 1 : i32
    %663 = vector.broadcast %c1_i32_153 : i32 to vector<1x128xi32>
    %664 = arith.subi %2, %663 : vector<1x128xi32>
    %665 = vector.broadcast %652 : i32 to vector<1x128xi32>
    %666 = arith.cmpi eq, %665, %664 : vector<1x128xi32>
    %667 = arith.select %666, %594, %662 : vector<1x128xi1>, vector<1x128xi32>
    %668 = arith.index_cast %652 : i32 to index
    %c0_154 = arith.constant 0 : index
    %669 = vector.load %arg5[%668, %c0_154] : memref<8x128xi32, #tpu.memory_space<vmem>>, vector<1x128xi32>
    tpu.vector_store %arg5[%668, %c0_154], %667 {strides = array<i32>} : memref<8x128xi32, #tpu.memory_space<vmem>>, vector<1x128xi32>,
    %c4_i32_155 = arith.constant 4 : i32
    %c6_i32_156 = arith.constant 6 : i32
    %670 = arith.subi %c6_i32_156, %c4_i32_155 : i32
    %671 = arith.index_cast %670 : i32 to index
    %c0_157 = arith.constant 0 : index
    %c0_158 = arith.constant 0 : index
    %672 = vector.load %arg7[%671, %c0_157, %c0_158] : memref<8x8x128xi8, #tpu.memory_space<vmem>>, vector<1x8x128xi8>
    %673 = vector.shape_cast %672 : vector<1x8x128xi8> to vector<8x128xi8>
    %674 = arith.extsi %673 : vector<8x128xi8> to vector<8x128xi32>
    %675 = vector.broadcast %667 : vector<1x128xi32> to vector<8x128xi32>
    %676 = arith.cmpi eq, %597, %675 : vector<8x128xi32>
    %c0_i32_159 = arith.constant 0 : i32
    %677 = vector.broadcast %c0_i32_159 : i32 to vector<8x128xi32>
    %678 = arith.select %676, %674, %677 : vector<8x128xi1>, vector<8x128xi32>
    %cst_160 = arith.constant dense<0> : vector<128xi32>
    %679 = vector.multi_reduction <add>, %678, %cst_160 [0] : vector<8x128xi32> to vector<128xi32>
    %680 = vector.shape_cast %679 : vector<128xi32> to vector<1x128xi32>
    %c1_i32_161 = arith.constant 1 : i32
    %681 = vector.broadcast %c1_i32_161 : i32 to vector<1x128xi32>
    %682 = arith.subi %2, %681 : vector<1x128xi32>
    %683 = vector.broadcast %670 : i32 to vector<1x128xi32>
    %684 = arith.cmpi eq, %683, %682 : vector<1x128xi32>
    %685 = arith.select %684, %594, %680 : vector<1x128xi1>, vector<1x128xi32>
    %686 = arith.index_cast %670 : i32 to index
    %c0_162 = arith.constant 0 : index
    %687 = vector.load %arg5[%686, %c0_162] : memref<8x128xi32, #tpu.memory_space<vmem>>, vector<1x128xi32>
    tpu.vector_store %arg5[%686, %c0_162], %685 {strides = array<i32>} : memref<8x128xi32, #tpu.memory_space<vmem>>, vector<1x128xi32>,
    %c5_i32_163 = arith.constant 5 : i32
    %c6_i32_164 = arith.constant 6 : i32
    %688 = arith.subi %c6_i32_164, %c5_i32_163 : i32
    %689 = arith.index_cast %688 : i32 to index
    %c0_165 = arith.constant 0 : index
    %c0_166 = arith.constant 0 : index
    %690 = vector.load %arg7[%689, %c0_165, %c0_166] : memref<8x8x128xi8, #tpu.memory_space<vmem>>, vector<1x8x128xi8>
    %691 = vector.shape_cast %690 : vector<1x8x128xi8> to vector<8x128xi8>
    %692 = arith.extsi %691 : vector<8x128xi8> to vector<8x128xi32>
    %693 = vector.broadcast %685 : vector<1x128xi32> to vector<8x128xi32>
    %694 = arith.cmpi eq, %597, %693 : vector<8x128xi32>
    %c0_i32_167 = arith.constant 0 : i32
    %695 = vector.broadcast %c0_i32_167 : i32 to vector<8x128xi32>
    %696 = arith.select %694, %692, %695 : vector<8x128xi1>, vector<8x128xi32>
    %cst_168 = arith.constant dense<0> : vector<128xi32>
    %697 = vector.multi_reduction <add>, %696, %cst_168 [0] : vector<8x128xi32> to vector<128xi32>
    %698 = vector.shape_cast %697 : vector<128xi32> to vector<1x128xi32>
    %c1_i32_169 = arith.constant 1 : i32
    %699 = vector.broadcast %c1_i32_169 : i32 to vector<1x128xi32>
    %700 = arith.subi %2, %699 : vector<1x128xi32>
    %701 = vector.broadcast %688 : i32 to vector<1x128xi32>
    %702 = arith.cmpi eq, %701, %700 : vector<1x128xi32>
    %703 = arith.select %702, %594, %698 : vector<1x128xi1>, vector<1x128xi32>
    %704 = arith.index_cast %688 : i32 to index
    %c0_170 = arith.constant 0 : index
    %705 = vector.load %arg5[%704, %c0_170] : memref<8x128xi32, #tpu.memory_space<vmem>>, vector<1x128xi32>
    tpu.vector_store %arg5[%704, %c0_170], %703 {strides = array<i32>} : memref<8x128xi32, #tpu.memory_space<vmem>>, vector<1x128xi32>,
    %c6_i32_171 = arith.constant 6 : i32
    %c6_i32_172 = arith.constant 6 : i32
    %706 = arith.subi %c6_i32_172, %c6_i32_171 : i32
    %707 = arith.index_cast %706 : i32 to index
    %c0_173 = arith.constant 0 : index
    %c0_174 = arith.constant 0 : index
    %708 = vector.load %arg7[%707, %c0_173, %c0_174] : memref<8x8x128xi8, #tpu.memory_space<vmem>>, vector<1x8x128xi8>
    %709 = vector.shape_cast %708 : vector<1x8x128xi8> to vector<8x128xi8>
    %710 = arith.extsi %709 : vector<8x128xi8> to vector<8x128xi32>
    %711 = vector.broadcast %703 : vector<1x128xi32> to vector<8x128xi32>
    %712 = arith.cmpi eq, %597, %711 : vector<8x128xi32>
    %c0_i32_175 = arith.constant 0 : i32
    %713 = vector.broadcast %c0_i32_175 : i32 to vector<8x128xi32>
    %714 = arith.select %712, %710, %713 : vector<8x128xi1>, vector<8x128xi32>
    %cst_176 = arith.constant dense<0> : vector<128xi32>
    %715 = vector.multi_reduction <add>, %714, %cst_176 [0] : vector<8x128xi32> to vector<128xi32>
    %716 = vector.shape_cast %715 : vector<128xi32> to vector<1x128xi32>
    %c1_i32_177 = arith.constant 1 : i32
    %717 = vector.broadcast %c1_i32_177 : i32 to vector<1x128xi32>
    %718 = arith.subi %2, %717 : vector<1x128xi32>
    %719 = vector.broadcast %706 : i32 to vector<1x128xi32>
    %720 = arith.cmpi eq, %719, %718 : vector<1x128xi32>
    %721 = arith.select %720, %594, %716 : vector<1x128xi1>, vector<1x128xi32>
    %722 = arith.index_cast %706 : i32 to index
    %c0_178 = arith.constant 0 : index
    %723 = vector.load %arg5[%722, %c0_178] : memref<8x128xi32, #tpu.memory_space<vmem>>, vector<1x128xi32>
    tpu.vector_store %arg5[%722, %c0_178], %721 {strides = array<i32>} : memref<8x128xi32, #tpu.memory_space<vmem>>, vector<1x128xi32>,
    %c7_i32_179 = arith.constant 7 : i32
    return
  }
  func.func @transform_0(%arg0: i32) -> (i32, i32, i32) {
    %c0_i32 = arith.constant 0 : i32
    %c0_i32_0 = arith.constant 0 : i32
    %c0_i32_1 = arith.constant 0 : i32
    return %c0_i32, %c0_i32_0, %arg0 : i32, i32, i32
  }
  func.func @transform_1(%arg0: i32) -> (i32, i32) {
    %c0_i32 = arith.constant 0 : i32
    %c0_i32_0 = arith.constant 0 : i32
    return %c0_i32, %arg0 : i32, i32
  }
  func.func @transform_2(%arg0: i32) -> (i32, i32) {
    %c0_i32 = arith.constant 0 : i32
    %c0_i32_0 = arith.constant 0 : i32
    %c0_i32_1 = arith.constant 0 : i32
    return %c0_i32, %c0_i32_0 : i32, i32
  }
  func.func @transform_3(%arg0: i32) -> (i32, i32) {
    %c0_i32 = arith.constant 0 : i32
    %c0_i32_0 = arith.constant 0 : i32
    %c0_i32_1 = arith.constant 0 : i32
    return %c0_i32, %c0_i32_0 : i32, i32
  }
  func.func @transform_4(%arg0: i32) -> (i32, i32) {
    %c0_i32 = arith.constant 0 : i32
    %c0_i32_0 = arith.constant 0 : i32
    return %c0_i32, %arg0 : i32, i32
  }
  func.func @transform_5(%arg0: i32) -> (i32, i32) {
    %c0_i32 = arith.constant 0 : i32
    %c0_i32_0 = arith.constant 0 : i32
    return %c0_i32, %arg0 : i32, i32
  }
}

</mosaic_0001>

<llo_original>
// kernel: tpu_custom_call.1
$region0: #{tpu_custom_call.1}
  #allocation0 [shape = 'u32[]', space=smem, size = 0x4, offset = 0x4, fixed_abs, tag = 'smem constant byte address 0x4 - core index']
  #allocation1 [shape = 'u32[144,128]{1,0:T(1,128)}', space=vmem, size = 0x12000, scoped, tag = 'internal scratch']
  #allocation2 [shape = 's8[8,8,128]{2,1,0:T(8,128)(4,1)}', space=vmem, size = 0x2000, scoped, tag = 'scratch operand']
  %s0 = inlined_call_operand.hbm [shape: f32[8,8,128], index: 0, kind: input, shape index: {}]
  %s1 = inlined_call_operand.vmem [shape: s32[1,128], index: 1, kind: input, shape index: {}]
  %s2 = inlined_call_operand.hbm [shape: f32[8,8], index: 2, kind: input, shape index: {}]
  %s3 = inlined_call_operand.vmem [shape: f32[8,8], index: 3, kind: input, shape index: {}]
  %s4 = inlined_call_operand.hbm [shape: s32[8,128], index: 4, kind: output, shape index: {0}]
  %s5 = inlined_call_operand.hbm [shape: f32[1,128], index: 5, kind: output, shape index: {1}]
  %6 = xla_tuple %s4, %s5
  %s7 = sld [smem:[#allocation0]]
  $region42: #{tpu_custom_call.1} parent=0
    _
  %s9 = ssub.s32 1, %s7
  %s10 = scalar_select 0, %s9, %s7
  $region1: #{tpu_custom_call.1} parent=0
    #allocation3 [shape = 'u8[32768]{0}', space=vmem, size = 0x8000, scoped, tag = 'input window, operand 0, single buffered']
    #allocation4 [shape = 's32[1]{0}', space=sflag, size = 0x4, scoped, tag = 'scoped memory for tpu_custom_call.1']
    #allocation5 [shape = 's32[1]{0}', space=sflag, size = 0x4, scoped, tag = 'scoped memory for tpu_custom_call.1']
    #allocation6 [shape = 'u8[4096]{0}', space=vmem, size = 0x1000, scoped, tag = 'input window, operand 2, single buffered']
    #allocation7 [shape = 's32[1]{0}', space=sflag, size = 0x4, scoped, tag = 'scoped memory for tpu_custom_call.1']
    #allocation8 [shape = 'u8[4096]{0}', space=vmem, size = 0x1000, scoped, tag = 'output window, operand 0, single buffered']
    #allocation9 [shape = 'u8[512]{0}', space=vmem, size = 0x400, scoped, tag = 'output window, operand 1, single buffered']
    #allocation10 [shape = 's32[1]{0}', space=sflag, size = 0x4, scoped, tag = 'scoped memory for tpu_custom_call.1']
    %11 = vsyncpa [#allocation4], 0
    %12 = vsyncpa [#allocation7], 0
    %13 = vsyncpa [#allocation5], 0
    %14 = vsyncpa [#allocation10], 0
    // Predicated region
    $region2: #{tpu_custom_call.1} parent=1 // pred_check
      _
    $region3: #{tpu_custom_call.1} parent=1 // pred_check_branch
      %16 = sbr.rel (0) target = $region5
    $region4: #{tpu_custom_call.1} parent=1 // pred_region
      %s18 = ssub.s32 1024, 1024
      %19 = vsyncadd [#allocation4], %s18
      %s20 = sshll.u32 [#allocation3], 4
      %s21 = int_to_ptr.vmem [resolvable:$true] %s20
      %26 = dma.hbm_to_vmem [thread:$0]  %s0, 1024, %s21, [#allocation4], 128, 128, 8
    $region5: #{tpu_custom_call.1} parent=1 // pred_fallthru
      _
    // Predicated region
    $region6: #{tpu_custom_call.1} parent=1 // pred_check
      _
    $region7: #{tpu_custom_call.1} parent=1 // pred_check_branch
      %28 = sbr.rel (0) target = $region9
    $region8: #{tpu_custom_call.1} parent=1 // pred_region
      _
    $region9: #{tpu_custom_call.1} parent=1 // pred_fallthru
      _
    // Predicated region
    $region10: #{tpu_custom_call.1} parent=1 // pred_check
      _
    $region11: #{tpu_custom_call.1} parent=1 // pred_check_branch
      %30 = sbr.rel (0) target = $region13
    $region12: #{tpu_custom_call.1} parent=1 // pred_region
      %s32 = ssub.s32 128, 128
      %33 = vsyncadd [#allocation7], %s32
      %s35 = sshll.u32 [#allocation6], 4
      %s36 = int_to_ptr.vmem [resolvable:$true] %s35
      %38 = dma.hbm_to_vmem [thread:$0]  %s2, 128, %s36, [#allocation7]
    $region13: #{tpu_custom_call.1} parent=1 // pred_fallthru
      _
    // Predicated region
    $region14: #{tpu_custom_call.1} parent=1 // pred_check
      _
    $region15: #{tpu_custom_call.1} parent=1 // pred_check_branch
      %40 = sbr.rel (0) target = $region17
    $region16: #{tpu_custom_call.1} parent=1 // pred_region
      _
    $region17: #{tpu_custom_call.1} parent=1 // pred_fallthru
      _
    // Predicated region
    $region18: #{tpu_custom_call.1} parent=1 // pred_check
      _
    $region19: #{tpu_custom_call.1} parent=1 // pred_check_branch
      %42 = sbr.rel (0) target = $region21
    $region20: #{tpu_custom_call.1} parent=1 // pred_region
      %43 = dma.done [#allocation4], 1024
    $region21: #{tpu_custom_call.1} parent=1 // pred_fallthru
      _
    // Predicated region
    $region22: #{tpu_custom_call.1} parent=1 // pred_check
      _
    $region23: #{tpu_custom_call.1} parent=1 // pred_check_branch
      %45 = sbr.rel (0) target = $region25
    $region24: #{tpu_custom_call.1} parent=1 // pred_region
      %46 = dma.done [#allocation7], 128
    $region25: #{tpu_custom_call.1} parent=1 // pred_fallthru
      _
    %v47 = vld [vmem:[#allocation6] sm:$0xff]
    %v48 = vld [vmem:[%s3] sm:$0xff]
    %v49 = vld [vmem:[%s1] sm:$0x1]
    %51 = vset.pattern.permute.xlu0 0
    %52 = vperm.xlu0 %51, %v48
    %v53 = vpop.permute.xlu0 %52
    %55 = vset.pattern.permute.xlu0 1
    %56 = vperm.xlu0 %55, %v48
    %v57 = vpop.permute.xlu0 %56
    %59 = vset.pattern.permute.xlu0 2
    %60 = vperm.xlu0 %59, %v48
    %v61 = vpop.permute.xlu0 %60
    %63 = vset.pattern.permute.xlu0 3
    %64 = vperm.xlu0 %63, %v48
    %v65 = vpop.permute.xlu0 %64
    %67 = vset.pattern.permute.xlu0 4
    %68 = vperm.xlu0 %67, %v48
    %v69 = vpop.permute.xlu0 %68
    %71 = vset.pattern.permute.xlu0 5
    %72 = vperm.xlu0 %71, %v48
    %v73 = vpop.permute.xlu0 %72
    %75 = vset.pattern.permute.xlu0 6
    %76 = vperm.xlu0 %75, %v48
    %v77 = vpop.permute.xlu0 %76
    %79 = vset.pattern.permute.xlu0 7
    %80 = vperm.xlu0 %79, %v48
    %v81 = vpop.permute.xlu0 %80
    %v83 = vld [vmem:[#allocation3] sm:$0xff]
    %v84 = vadd.f32 %v77, %v83
    %s85 = scalar_lea.vmem [#allocation3], 8
    %v86 = vld [vmem:[%s85] sm:$0xff]
    %v87 = vlaneseq
    %v88 = vshrl.u32 %v87, 7
    %v89 = vsub.s32 0, %v88
    %v90 = vrot.slane %v84, %v89
    %v91 = vadd.f32 %v90, %v53
    %v92 = vlaneseq
    %v93 = vshrl.u32 %v92, 7
    %v94 = vsub.s32 1, %v93
    %v95 = vrot.slane %v84, %v94
    %v96 = vadd.f32 %v95, %v57
    %v97 = vlaneseq
    %v98 = vshrl.u32 %v97, 7
    %v99 = vsub.s32 2, %v98
    %v100 = vrot.slane %v84, %v99
    %v101 = vadd.f32 %v100, %v61
    %v102 = vlaneseq
    %v103 = vshrl.u32 %v102, 7
    %v104 = vsub.s32 3, %v103
    %v105 = vrot.slane %v84, %v104
    %v106 = vadd.f32 %v105, %v65
    %v107 = vlaneseq
    %v108 = vshrl.u32 %v107, 7
    %v109 = vsub.s32 4, %v108
    %v110 = vrot.slane %v84, %v109
    %v111 = vadd.f32 %v110, %v69
    %v112 = vlaneseq
    %v113 = vshrl.u32 %v112, 7
    %v114 = vsub.s32 5, %v113
    %v115 = vrot.slane %v84, %v114
    %v116 = vadd.f32 %v115, %v73
    %v117 = vlaneseq
    %v118 = vshrl.u32 %v117, 7
    %v119 = vsub.s32 6, %v118
    %v120 = vrot.slane %v84, %v119
    %v121 = vadd.f32 %v120, %v77
    %v122 = vlaneseq
    %v123 = vshrl.u32 %v122, 7
    %v124 = vsub.s32 7, %v123
    %v125 = vrot.slane %v84, %v124
    %v126 = vadd.f32 %v125, %v81
    %vm127 = vcmp.gt.f32.partialorder %v96, %v91
    %v128 = vsel %vm127, %v96, %v91
    %v129 = vsel %vm127, 1, 0
    %vm130 = vcmp.gt.f32.partialorder %v106, %v101
    %v131 = vsel %vm130, %v106, %v101
    %v132 = vsel %vm130, 3, 2
    %vm133 = vcmp.gt.f32.partialorder %v116, %v111
    %v134 = vsel %vm133, %v116, %v111
    %v135 = vsel %vm133, 5, 4
    %vm136 = vcmp.gt.f32.partialorder %v126, %v121
    %v137 = vsel %vm136, %v126, %v121
    %v138 = vsel %vm136, 7, 6
    %vm139 = vcmp.gt.f32.partialorder %v131, %v128
    %v140 = vsel %vm139, %v131, %v128
    %v141 = vsel %vm139, %v132, %v129
    %vm142 = vcmp.gt.f32.partialorder %v137, %v134
    %v143 = vsel %vm142, %v137, %v134
    %v144 = vsel %vm142, %v138, %v135
    %vm145 = vcmp.gt.f32.partialorder %v143, %v140
    %v146 = vsel %vm145, %v143, %v140
    %v147 = vsel %vm145, %v144, %v141
    %v148 = vadd.f32 %v146, %v86
    %vm149 = vcmp.gt.s32.totalorder %v49, 1
    %v150 = vsel %vm149, 1, 0
    %v151 = vlaneseq
    %v152 = vshrl.u32 %v151, 7
    %v153 = vsub.s32 0, %v152
    %v154 = vrot.slane %v150, %v153
    %vm155 = vcmp.eq.s32.totalorder %v154, 1
    %v156 = vsel %vm155, %v147, 0
    %v157 = vpack.c.b16 %v156, %v156
    %v158 = vpack.c.b8 %v157, %v157
    %159 = vst [vmem:[#allocation2] sm:$0x3] %v158
    %v160 = vsub.s32 %v49, 1
    %vm161 = vcmp.eq.s32.totalorder %v160, 1
    %v162 = vsel %vm161, 1, 0
    %v163 = vlaneseq
    %v164 = vshrl.u32 %v163, 7
    %v165 = vsub.s32 0, %v164
    %v166 = vrot.slane %v162, %v165
    %vm167 = vcmp.eq.s32.totalorder %v166, 1
    %v168 = vsel %vm167, %v148, %v84
    %s169 = scalar_lea.vmem [#allocation3], 16
    %v170 = vld [vmem:[%s169] sm:$0xff]
    %v171 = vlaneseq
    %v172 = vshrl.u32 %v171, 7
    %v173 = vsub.s32 0, %v172
    %v174 = vrot.slane %v148, %v173
    %v175 = vadd.f32 %v174, %v53
    %v176 = vlaneseq
    %v177 = vshrl.u32 %v176, 7
    %v178 = vsub.s32 1, %v177
    %v179 = vrot.slane %v148, %v178
    %v180 = vadd.f32 %v179, %v57
    %v181 = vlaneseq
    %v182 = vshrl.u32 %v181, 7
    %v183 = vsub.s32 2, %v182
    %v184 = vrot.slane %v148, %v183
    %v185 = vadd.f32 %v184, %v61
    %v186 = vlaneseq
    %v187 = vshrl.u32 %v186, 7
    %v188 = vsub.s32 3, %v187
    %v189 = vrot.slane %v148, %v188
    %v190 = vadd.f32 %v189, %v65
    %v191 = vlaneseq
    %v192 = vshrl.u32 %v191, 7
    %v193 = vsub.s32 4, %v192
    %v194 = vrot.slane %v148, %v193
    %v195 = vadd.f32 %v194, %v69
    %v196 = vlaneseq
    %v197 = vshrl.u32 %v196, 7
    %v198 = vsub.s32 5, %v197
    %v199 = vrot.slane %v148, %v198
    %v200 = vadd.f32 %v199, %v73
    %v201 = vlaneseq
    %v202 = vshrl.u32 %v201, 7
    %v203 = vsub.s32 6, %v202
    %v204 = vrot.slane %v148, %v203
    %v205 = vadd.f32 %v204, %v77
    %v206 = vlaneseq
    %v207 = vshrl.u32 %v206, 7
    %v208 = vsub.s32 7, %v207
    %v209 = vrot.slane %v148, %v208
    %v210 = vadd.f32 %v209, %v81
    %vm211 = vcmp.gt.f32.partialorder %v180, %v175
    %v212 = vsel %vm211, %v180, %v175
    %v213 = vsel %vm211, 1, 0
    %vm214 = vcmp.gt.f32.partialorder %v190, %v185
    %v215 = vsel %vm214, %v190, %v185
    %v216 = vsel %vm214, 3, 2
    %vm217 = vcmp.gt.f32.partialorder %v200, %v195
    %v218 = vsel %vm217, %v200, %v195
    %v219 = vsel %vm217, 5, 4
    %vm220 = vcmp.gt.f32.partialorder %v210, %v205
    %v221 = vsel %vm220, %v210, %v205
    %v222 = vsel %vm220, 7, 6
    %vm223 = vcmp.gt.f32.partialorder %v215, %v212
    %v224 = vsel %vm223, %v215, %v212
    %v225 = vsel %vm223, %v216, %v213
    %vm226 = vcmp.gt.f32.partialorder %v221, %v218
    %v227 = vsel %vm226, %v221, %v218
    %v228 = vsel %vm226, %v222, %v219
    %vm229 = vcmp.gt.f32.partialorder %v227, %v224
    %v230 = vsel %vm229, %v227, %v224
    %v231 = vsel %vm229, %v228, %v225
    %v232 = vadd.f32 %v230, %v170
    %vm233 = vcmp.gt.s32.totalorder %v49, 2
    %v234 = vsel %vm233, 1, 0
    %v235 = vlaneseq
    %v236 = vshrl.u32 %v235, 7
    %v237 = vsub.s32 0, %v236
    %v238 = vrot.slane %v234, %v237
    %vm239 = vcmp.eq.s32.totalorder %v238, 1
    %v240 = vsel %vm239, %v231, 0
    %v241 = vpack.c.b16 %v240, %v240
    %v242 = vpack.c.b8 %v241, %v241
    %s243 = scalar_lea.vmem [#allocation2], 2
    %244 = vst [vmem:[%s243] sm:$0x3] %v242
    %vm245 = vcmp.eq.s32.totalorder %v160, 2
    %v246 = vsel %vm245, 1, 0
    %v247 = vlaneseq
    %v248 = vshrl.u32 %v247, 7
    %v249 = vsub.s32 0, %v248
    %v250 = vrot.slane %v246, %v249
    %vm251 = vcmp.eq.s32.totalorder %v250, 1
    %v252 = vsel %vm251, %v232, %v168
    %s253 = scalar_lea.vmem [#allocation3], 24
    %v254 = vld [vmem:[%s253] sm:$0xff]
    %v255 = vlaneseq
    %v256 = vshrl.u32 %v255, 7
    %v257 = vsub.s32 0, %v256
    %v258 = vrot.slane %v232, %v257
    %v259 = vadd.f32 %v258, %v53
    %v260 = vlaneseq
    %v261 = vshrl.u32 %v260, 7
    %v262 = vsub.s32 1, %v261
    %v263 = vrot.slane %v232, %v262
    %v264 = vadd.f32 %v263, %v57
    %v265 = vlaneseq
    %v266 = vshrl.u32 %v265, 7
    %v267 = vsub.s32 2, %v266
    %v268 = vrot.slane %v232, %v267
    %v269 = vadd.f32 %v268, %v61
    %v270 = vlaneseq
    %v271 = vshrl.u32 %v270, 7
    %v272 = vsub.s32 3, %v271
    %v273 = vrot.slane %v232, %v272
    %v274 = vadd.f32 %v273, %v65
    %v275 = vlaneseq
    %v276 = vshrl.u32 %v275, 7
    %v277 = vsub.s32 4, %v276
    %v278 = vrot.slane %v232, %v277
    %v279 = vadd.f32 %v278, %v69
    %v280 = vlaneseq
    %v281 = vshrl.u32 %v280, 7
    %v282 = vsub.s32 5, %v281
    %v283 = vrot.slane %v232, %v282
    %v284 = vadd.f32 %v283, %v73
    %v285 = vlaneseq
    %v286 = vshrl.u32 %v285, 7
    %v287 = vsub.s32 6, %v286
    %v288 = vrot.slane %v232, %v287
    %v289 = vadd.f32 %v288, %v77
    %v290 = vlaneseq
    %v291 = vshrl.u32 %v290, 7
    %v292 = vsub.s32 7, %v291
    %v293 = vrot.slane %v232, %v292
    %v294 = vadd.f32 %v293, %v81
    %vm295 = vcmp.gt.f32.partialorder %v264, %v259
    %v296 = vsel %vm295, %v264, %v259
    %v297 = vsel %vm295, 1, 0
    %vm298 = vcmp.gt.f32.partialorder %v274, %v269
    %v299 = vsel %vm298, %v274, %v269
    %v300 = vsel %vm298, 3, 2
    %vm301 = vcmp.gt.f32.partialorder %v284, %v279
    %v302 = vsel %vm301, %v284, %v279
    %v303 = vsel %vm301, 5, 4
    %vm304 = vcmp.gt.f32.partialorder %v294, %v289
    %v305 = vsel %vm304, %v294, %v289
    %v306 = vsel %vm304, 7, 6
    %vm307 = vcmp.gt.f32.partialorder %v299, %v296
    %v308 = vsel %vm307, %v299, %v296
    %v309 = vsel %vm307, %v300, %v297
    %vm310 = vcmp.gt.f32.partialorder %v305, %v302
    %v311 = vsel %vm310, %v305, %v302
    %v312 = vsel %vm310, %v306, %v303
    %vm313 = vcmp.gt.f32.partialorder %v311, %v308
    %v314 = vsel %vm313, %v311, %v308
    %v315 = vsel %vm313, %v312, %v309
    %v316 = vadd.f32 %v314, %v254
    %vm317 = vcmp.gt.s32.totalorder %v49, 3
    %v318 = vsel %vm317, 1, 0
    %v319 = vlaneseq
    %v320 = vshrl.u32 %v319, 7
    %v321 = vsub.s32 0, %v320
    %v322 = vrot.slane %v318, %v321
    %vm323 = vcmp.eq.s32.totalorder %v322, 1
    %v324 = vsel %vm323, %v315, 0
    %v325 = vpack.c.b16 %v324, %v324
    %v326 = vpack.c.b8 %v325, %v325
    %s327 = scalar_lea.vmem [#allocation2], 4
    %328 = vst [vmem:[%s327] sm:$0x3] %v326
    %vm329 = vcmp.eq.s32.totalorder %v160, 3
    %v330 = vsel %vm329, 1, 0
    %v331 = vlaneseq
    %v332 = vshrl.u32 %v331, 7
    %v333 = vsub.s32 0, %v332
    %v334 = vrot.slane %v330, %v333
    %vm335 = vcmp.eq.s32.totalorder %v334, 1
    %v336 = vsel %vm335, %v316, %v252
    %s337 = scalar_lea.vmem [#allocation3], 32
    %v338 = vld [vmem:[%s337] sm:$0xff]
    %v339 = vlaneseq
    %v340 = vshrl.u32 %v339, 7
    %v341 = vsub.s32 0, %v340
    %v342 = vrot.slane %v316, %v341
    %v343 = vadd.f32 %v342, %v53
    %v344 = vlaneseq
    %v345 = vshrl.u32 %v344, 7
    %v346 = vsub.s32 1, %v345
    %v347 = vrot.slane %v316, %v346
    %v348 = vadd.f32 %v347, %v57
    %v349 = vlaneseq
    %v350 = vshrl.u32 %v349, 7
    %v351 = vsub.s32 2, %v350
    %v352 = vrot.slane %v316, %v351
    %v353 = vadd.f32 %v352, %v61
    %v354 = vlaneseq
    %v355 = vshrl.u32 %v354, 7
    %v356 = vsub.s32 3, %v355
    %v357 = vrot.slane %v316, %v356
    %v358 = vadd.f32 %v357, %v65
    %v359 = vlaneseq
    %v360 = vshrl.u32 %v359, 7
    %v361 = vsub.s32 4, %v360
    %v362 = vrot.slane %v316, %v361
    %v363 = vadd.f32 %v362, %v69
    %v364 = vlaneseq
    %v365 = vshrl.u32 %v364, 7
    %v366 = vsub.s32 5, %v365
    %v367 = vrot.slane %v316, %v366
    %v368 = vadd.f32 %v367, %v73
    %v369 = vlaneseq
    %v370 = vshrl.u32 %v369, 7
    %v371 = vsub.s32 6, %v370
    %v372 = vrot.slane %v316, %v371
    %v373 = vadd.f32 %v372, %v77
    %v374 = vlaneseq
    %v375 = vshrl.u32 %v374, 7
    %v376 = vsub.s32 7, %v375
    %v377 = vrot.slane %v316, %v376
    %v378 = vadd.f32 %v377, %v81
    %vm379 = vcmp.gt.f32.partialorder %v348, %v343
    %v380 = vsel %vm379, %v348, %v343
    %v381 = vsel %vm379, 1, 0
    %vm382 = vcmp.gt.f32.partialorder %v358, %v353
    %v383 = vsel %vm382, %v358, %v353
    %v384 = vsel %vm382, 3, 2
    %vm385 = vcmp.gt.f32.partialorder %v368, %v363
    %v386 = vsel %vm385, %v368, %v363
    %v387 = vsel %vm385, 5, 4
    %vm388 = vcmp.gt.f32.partialorder %v378, %v373
    %v389 = vsel %vm388, %v378, %v373
    %v390 = vsel %vm388, 7, 6
    %vm391 = vcmp.gt.f32.partialorder %v383, %v380
    %v392 = vsel %vm391, %v383, %v380
    %v393 = vsel %vm391, %v384, %v381
    %vm394 = vcmp.gt.f32.partialorder %v389, %v386
    %v395 = vsel %vm394, %v389, %v386
    %v396 = vsel %vm394, %v390, %v387
    %vm397 = vcmp.gt.f32.partialorder %v395, %v392
    %v398 = vsel %vm397, %v395, %v392
    %v399 = vsel %vm397, %v396, %v393
    %v400 = vadd.f32 %v398, %v338
    %vm401 = vcmp.gt.s32.totalorder %v49, 4
    %v402 = vsel %vm401, 1, 0
    %v403 = vlaneseq
    %v404 = vshrl.u32 %v403, 7
    %v405 = vsub.s32 0, %v404
    %v406 = vrot.slane %v402, %v405
    %vm407 = vcmp.eq.s32.totalorder %v406, 1
    %v408 = vsel %vm407, %v399, 0
    %v409 = vpack.c.b16 %v408, %v408
    %v410 = vpack.c.b8 %v409, %v409
    %s411 = scalar_lea.vmem [#allocation2], 6
    %412 = vst [vmem:[%s411] sm:$0x3] %v410
    %vm413 = vcmp.eq.s32.totalorder %v160, 4
    %v414 = vsel %vm413, 1, 0
    %v415 = vlaneseq
    %v416 = vshrl.u32 %v415, 7
    %v417 = vsub.s32 0, %v416
    %v418 = vrot.slane %v414, %v417
    %vm419 = vcmp.eq.s32.totalorder %v418, 1
    %v420 = vsel %vm419, %v400, %v336
    %s421 = scalar_lea.vmem [#allocation3], 40
    %v422 = vld [vmem:[%s421] sm:$0xff]
    %v423 = vlaneseq
    %v424 = vshrl.u32 %v423, 7
    %v425 = vsub.s32 0, %v424
    %v426 = vrot.slane %v400, %v425
    %v427 = vadd.f32 %v426, %v53
    %v428 = vlaneseq
    %v429 = vshrl.u32 %v428, 7
    %v430 = vsub.s32 1, %v429
    %v431 = vrot.slane %v400, %v430
    %v432 = vadd.f32 %v431, %v57
    %v433 = vlaneseq
    %v434 = vshrl.u32 %v433, 7
    %v435 = vsub.s32 2, %v434
    %v436 = vrot.slane %v400, %v435
    %v437 = vadd.f32 %v436, %v61
    %v438 = vlaneseq
    %v439 = vshrl.u32 %v438, 7
    %v440 = vsub.s32 3, %v439
    %v441 = vrot.slane %v400, %v440
    %v442 = vadd.f32 %v441, %v65
    %v443 = vlaneseq
    %v444 = vshrl.u32 %v443, 7
    %v445 = vsub.s32 4, %v444
    %v446 = vrot.slane %v400, %v445
    %v447 = vadd.f32 %v446, %v69
    %v448 = vlaneseq
    %v449 = vshrl.u32 %v448, 7
    %v450 = vsub.s32 5, %v449
    %v451 = vrot.slane %v400, %v450
    %v452 = vadd.f32 %v451, %v73
    %v453 = vlaneseq
    %v454 = vshrl.u32 %v453, 7
    %v455 = vsub.s32 6, %v454
    %v456 = vrot.slane %v400, %v455
    %v457 = vadd.f32 %v456, %v77
    %v458 = vlaneseq
    %v459 = vshrl.u32 %v458, 7
    %v460 = vsub.s32 7, %v459
    %v461 = vrot.slane %v400, %v460
    %v462 = vadd.f32 %v461, %v81
    %vm463 = vcmp.gt.f32.partialorder %v432, %v427
    %v464 = vsel %vm463, %v432, %v427
    %v465 = vsel %vm463, 1, 0
    %vm466 = vcmp.gt.f32.partialorder %v442, %v437
    %v467 = vsel %vm466, %v442, %v437
    %v468 = vsel %vm466, 3, 2
    %vm469 = vcmp.gt.f32.partialorder %v452, %v447
    %v470 = vsel %vm469, %v452, %v447
    %v471 = vsel %vm469, 5, 4
    %vm472 = vcmp.gt.f32.partialorder %v462, %v457
    %v473 = vsel %vm472, %v462, %v457
    %v474 = vsel %vm472, 7, 6
    %vm475 = vcmp.gt.f32.partialorder %v467, %v464
    %v476 = vsel %vm475, %v467, %v464
    %v477 = vsel %vm475, %v468, %v465
    %vm478 = vcmp.gt.f32.partialorder %v473, %v470
    %v479 = vsel %vm478, %v473, %v470
    %v480 = vsel %vm478, %v474, %v471
    %vm481 = vcmp.gt.f32.partialorder %v479, %v476
    %v482 = vsel %vm481, %v479, %v476
    %v483 = vsel %vm481, %v480, %v477
    %v484 = vadd.f32 %v482, %v422
    %vm485 = vcmp.gt.s32.totalorder %v49, 5
    %v486 = vsel %vm485, 1, 0
    %v487 = vlaneseq
    %v488 = vshrl.u32 %v487, 7
    %v489 = vsub.s32 0, %v488
    %v490 = vrot.slane %v486, %v489
    %vm491 = vcmp.eq.s32.totalorder %v490, 1
    %v492 = vsel %vm491, %v483, 0
    %v493 = vpack.c.b16 %v492, %v492
    %v494 = vpack.c.b8 %v493, %v493
    %s495 = scalar_lea.vmem [#allocation2], 8
    %496 = vst [vmem:[%s495] sm:$0x3] %v494
    %vm497 = vcmp.eq.s32.totalorder %v160, 5
    %v498 = vsel %vm497, 1, 0
    %v499 = vlaneseq
    %v500 = vshrl.u32 %v499, 7
    %v501 = vsub.s32 0, %v500
    %v502 = vrot.slane %v498, %v501
    %vm503 = vcmp.eq.s32.totalorder %v502, 1
    %v504 = vsel %vm503, %v484, %v420
    %s505 = scalar_lea.vmem [#allocation3], 48
    %v506 = vld [vmem:[%s505] sm:$0xff]
    %v507 = vlaneseq
    %v508 = vshrl.u32 %v507, 7
    %v509 = vsub.s32 0, %v508
    %v510 = vrot.slane %v484, %v509
    %v511 = vadd.f32 %v510, %v53
    %v512 = vlaneseq
    %v513 = vshrl.u32 %v512, 7
    %v514 = vsub.s32 1, %v513
    %v515 = vrot.slane %v484, %v514
    %v516 = vadd.f32 %v515, %v57
    %v517 = vlaneseq
    %v518 = vshrl.u32 %v517, 7
    %v519 = vsub.s32 2, %v518
    %v520 = vrot.slane %v484, %v519
    %v521 = vadd.f32 %v520, %v61
    %v522 = vlaneseq
    %v523 = vshrl.u32 %v522, 7
    %v524 = vsub.s32 3, %v523
    %v525 = vrot.slane %v484, %v524
    %v526 = vadd.f32 %v525, %v65
    %v527 = vlaneseq
    %v528 = vshrl.u32 %v527, 7
    %v529 = vsub.s32 4, %v528
    %v530 = vrot.slane %v484, %v529
    %v531 = vadd.f32 %v530, %v69
    %v532 = vlaneseq
    %v533 = vshrl.u32 %v532, 7
    %v534 = vsub.s32 5, %v533
    %v535 = vrot.slane %v484, %v534
    %v536 = vadd.f32 %v535, %v73
    %v537 = vlaneseq
    %v538 = vshrl.u32 %v537, 7
    %v539 = vsub.s32 6, %v538
    %v540 = vrot.slane %v484, %v539
    %v541 = vadd.f32 %v540, %v77
    %v542 = vlaneseq
    %v543 = vshrl.u32 %v542, 7
    %v544 = vsub.s32 7, %v543
    %v545 = vrot.slane %v484, %v544
    %v546 = vadd.f32 %v545, %v81
    %vm547 = vcmp.gt.f32.partialorder %v516, %v511
    %v548 = vsel %vm547, %v516, %v511
    %v549 = vsel %vm547, 1, 0
    %vm550 = vcmp.gt.f32.partialorder %v526, %v521
    %v551 = vsel %vm550, %v526, %v521
    %v552 = vsel %vm550, 3, 2
    %vm553 = vcmp.gt.f32.partialorder %v536, %v531
    %v554 = vsel %vm553, %v536, %v531
    %v555 = vsel %vm553, 5, 4
    %vm556 = vcmp.gt.f32.partialorder %v546, %v541
    %v557 = vsel %vm556, %v546, %v541
    %v558 = vsel %vm556, 7, 6
    %vm559 = vcmp.gt.f32.partialorder %v551, %v548
    %v560 = vsel %vm559, %v551, %v548
    %v561 = vsel %vm559, %v552, %v549
    %vm562 = vcmp.gt.f32.partialorder %v557, %v554
    %v563 = vsel %vm562, %v557, %v554
    %v564 = vsel %vm562, %v558, %v555
    %vm565 = vcmp.gt.f32.partialorder %v563, %v560
    %v566 = vsel %vm565, %v563, %v560
    %v567 = vsel %vm565, %v564, %v561
    %v568 = vadd.f32 %v566, %v506
    %vm569 = vcmp.gt.s32.totalorder %v49, 6
    %v570 = vsel %vm569, 1, 0
    %v571 = vlaneseq
    %v572 = vshrl.u32 %v571, 7
    %v573 = vsub.s32 0, %v572
    %v574 = vrot.slane %v570, %v573
    %vm575 = vcmp.eq.s32.totalorder %v574, 1
    %v576 = vsel %vm575, %v567, 0
    %v577 = vpack.c.b16 %v576, %v576
    %v578 = vpack.c.b8 %v577, %v577
    %s579 = scalar_lea.vmem [#allocation2], 10
    %580 = vst [vmem:[%s579] sm:$0x3] %v578
    %vm581 = vcmp.eq.s32.totalorder %v160, 6
    %v582 = vsel %vm581, 1, 0
    %v583 = vlaneseq
    %v584 = vshrl.u32 %v583, 7
    %v585 = vsub.s32 0, %v584
    %v586 = vrot.slane %v582, %v585
    %vm587 = vcmp.eq.s32.totalorder %v586, 1
    %v588 = vsel %vm587, %v568, %v504
    %s589 = scalar_lea.vmem [#allocation3], 56
    %v590 = vld [vmem:[%s589] sm:$0xff]
    %v591 = vlaneseq
    %v592 = vshrl.u32 %v591, 7
    %v593 = vsub.s32 0, %v592
    %v594 = vrot.slane %v568, %v593
    %v595 = vadd.f32 %v594, %v53
    %v596 = vlaneseq
    %v597 = vshrl.u32 %v596, 7
    %v598 = vsub.s32 1, %v597
    %v599 = vrot.slane %v568, %v598
    %v600 = vadd.f32 %v599, %v57
    %v601 = vlaneseq
    %v602 = vshrl.u32 %v601, 7
    %v603 = vsub.s32 2, %v602
    %v604 = vrot.slane %v568, %v603
    %v605 = vadd.f32 %v604, %v61
    %v606 = vlaneseq
    %v607 = vshrl.u32 %v606, 7
    %v608 = vsub.s32 3, %v607
    %v609 = vrot.slane %v568, %v608
    %v610 = vadd.f32 %v609, %v65
    %v611 = vlaneseq
    %v612 = vshrl.u32 %v611, 7
    %v613 = vsub.s32 4, %v612
    %v614 = vrot.slane %v568, %v613
    %v615 = vadd.f32 %v614, %v69
    %v616 = vlaneseq
    %v617 = vshrl.u32 %v616, 7
    %v618 = vsub.s32 5, %v617
    %v619 = vrot.slane %v568, %v618
    %v620 = vadd.f32 %v619, %v73
    %v621 = vlaneseq
    %v622 = vshrl.u32 %v621, 7
    %v623 = vsub.s32 6, %v622
    %v624 = vrot.slane %v568, %v623
    %v625 = vadd.f32 %v624, %v77
    %v626 = vlaneseq
    %v627 = vshrl.u32 %v626, 7
    %v628 = vsub.s32 7, %v627
    %v629 = vrot.slane %v568, %v628
    %v630 = vadd.f32 %v629, %v81
    %vm631 = vcmp.gt.f32.partialorder %v600, %v595
    %v632 = vsel %vm631, %v600, %v595
    %v633 = vsel %vm631, 1, 0
    %vm634 = vcmp.gt.f32.partialorder %v610, %v605
    %v635 = vsel %vm634, %v610, %v605
    %v636 = vsel %vm634, 3, 2
    %vm637 = vcmp.gt.f32.partialorder %v620, %v615
    %v638 = vsel %vm637, %v620, %v615
    %v639 = vsel %vm637, 5, 4
    %vm640 = vcmp.gt.f32.partialorder %v630, %v625
    %v641 = vsel %vm640, %v630, %v625
    %v642 = vsel %vm640, 7, 6
    %vm643 = vcmp.gt.f32.partialorder %v635, %v632
    %v644 = vsel %vm643, %v635, %v632
    %v645 = vsel %vm643, %v636, %v633
    %vm646 = vcmp.gt.f32.partialorder %v641, %v638
    %v647 = vsel %vm646, %v641, %v638
    %v648 = vsel %vm646, %v642, %v639
    %vm649 = vcmp.gt.f32.partialorder %v647, %v644
    %v650 = vsel %vm649, %v647, %v644
    %v651 = vsel %vm649, %v648, %v645
    %v652 = vadd.f32 %v650, %v590
    %vm653 = vcmp.gt.s32.totalorder %v49, 7
    %v654 = vsel %vm653, 1, 0
    %v655 = vlaneseq
    %v656 = vshrl.u32 %v655, 7
    %v657 = vsub.s32 0, %v656
    %v658 = vrot.slane %v654, %v657
    %vm659 = vcmp.eq.s32.totalorder %v658, 1
    %v660 = vsel %vm659, %v651, 0
    %v661 = vpack.c.b16 %v660, %v660
    %v662 = vpack.c.b8 %v661, %v661
    %s663 = scalar_lea.vmem [#allocation2], 12
    %664 = vst [vmem:[%s663] sm:$0x3] %v662
    %vm665 = vcmp.eq.s32.totalorder %v160, 7
    %v666 = vsel %vm665, 1, 0
    %v667 = vlaneseq
    %v668 = vshrl.u32 %v667, 7
    %v669 = vsub.s32 0, %v668
    %v670 = vrot.slane %v666, %v669
    %vm671 = vcmp.eq.s32.totalorder %v670, 1
    %v672 = vsel %vm671, %v652, %v588
    %674 = vset.pattern.permute.xlu0 7
    %675 = vperm.xlu0 %674, %v47
    %v676 = vpop.permute.xlu0 %675
    %v678 = vadd.f32 %v672, %v676
    %v680 = vrot.slane %v678, 7
    %vm682 = vcmp.gt.f32.partialorder %v678, %v680
    %v683 = vsel %vm682, %v678, %v680
    %v684 = vsel %vm682, 1, 0
    %v685 = vsel %vm682, 3, 2
    %v686 = vsel %vm682, 5, 4
    %v687 = vsel %vm682, 7, 6
    %v689 = vrot.slane %v683, 6
    %vm691 = vcmp.gt.f32.partialorder %v683, %v689
    %v692 = vsel %vm691, %v683, %v689
    %v693 = vrot.slane %v684, 6
    %v694 = vsel %vm691, %v685, %v693
    %v695 = vrot.slane %v686, 6
    %v696 = vsel %vm691, %v687, %v695
    %v698 = vrot.slane %v692, 4
    %vm700 = vcmp.gt.f32.partialorder %v692, %v698
    %v701 = vsel %vm700, %v692, %v698
    %v702 = vrot.slane %v694, 4
    %v703 = vsel %vm700, %v696, %v702
    %704 = vst [vmem:[#allocation9 - $0x7] sm:$0x80] %v701
    %705 = vst [vmem:[#allocation8] sm:$0x80] %v703
    %v706 = vlaneseq
    %v707 = vshrl.u32 %v706, 7
    %v708 = vld [vmem:[%s663] sm:$0x3]
    %v709 = vunpack.c.0.s8 %v708
    %v710 = vlaneseq
    %v711 = vshrl.u32 %v710, 7
    %v712 = vsub.s32 7, %v711
    %v713 = vrot.slane %v703, %v712
    %vm714 = vcmp.eq.s32.totalorder %v707, %v713
    %v715 = vsel %vm714, %v709, 0
    %v716 = vrot.slane %v715, 4
    %v717 = vadd.s32 %v715, %v716
    %v718 = vrot.slane %v717, 2
    %v719 = vadd.s32 %v717, %v718
    %v720 = vrot.slane %v719, 1
    %v721 = vadd.s32 %v719, %v720
    %v722 = vcombine.high %v703, %v703
    %v724 = vunpack.c.l.s4 1966171168
    %v725 = vunpack.c.0.s8 %v724
    %v726 = vlaneseq
    %v727 = vshrl.u32 %v726, 7
    %v728 = vsub.s32 %v725, %v727
    %v729 = vrot.slane %v722, %v728
    %v730 = vcombine.high %v729, %v729
    %v732 = vunpack.c.l.s4 1966171168
    %v733 = vunpack.c.0.s8 %v732
    %v734 = vlaneseq
    %v735 = vshrl.u32 %v734, 7
    %v736 = vsub.s32 %v733, %v735
    %v737 = vrot.slane %v730, %v736
    %v738 = vcombine.high %v737, %v737
    %v739 = vsel %vm581, %v738, %v721
    %740 = vst [vmem:[#allocation8 + $0x6] sm:$0x1] %v739
    %v741 = vld [vmem:[%s579] sm:$0x3]
    %v742 = vunpack.c.0.s8 %v741
    %v743 = vlaneseq
    %v744 = vshrl.u32 %v743, 7
    %v745 = vsub.s32 0, %v744
    %v746 = vrot.slane %v739, %v745
    %vm747 = vcmp.eq.s32.totalorder %v707, %v746
    %v748 = vsel %vm747, %v742, 0
    %v749 = vrot.slane %v748, 4
    %v750 = vadd.s32 %v748, %v749
    %v751 = vrot.slane %v750, 2
    %v752 = vadd.s32 %v750, %v751
    %v753 = vrot.slane %v752, 1
    %v754 = vadd.s32 %v752, %v753
    %v755 = vsel %vm497, %v738, %v754
    %756 = vst [vmem:[#allocation8 + $0x5] sm:$0x1] %v755
    %v757 = vld [vmem:[%s495] sm:$0x3]
    %v758 = vunpack.c.0.s8 %v757
    %v759 = vlaneseq
    %v760 = vshrl.u32 %v759, 7
    %v761 = vsub.s32 0, %v760
    %v762 = vrot.slane %v755, %v761
    %vm763 = vcmp.eq.s32.totalorder %v707, %v762
    %v764 = vsel %vm763, %v758, 0
    %v765 = vrot.slane %v764, 4
    %v766 = vadd.s32 %v764, %v765
    %v767 = vrot.slane %v766, 2
    %v768 = vadd.s32 %v766, %v767
    %v769 = vrot.slane %v768, 1
    %v770 = vadd.s32 %v768, %v769
    %v771 = vsel %vm413, %v738, %v770
    %772 = vst [vmem:[#allocation8 + $0x4] sm:$0x1] %v771
    %v773 = vld [vmem:[%s411] sm:$0x3]
    %v774 = vunpack.c.0.s8 %v773
    %v775 = vlaneseq
    %v776 = vshrl.u32 %v775, 7
    %v777 = vsub.s32 0, %v776
    %v778 = vrot.slane %v771, %v777
    %vm779 = vcmp.eq.s32.totalorder %v707, %v778
    %v780 = vsel %vm779, %v774, 0
    %v781 = vrot.slane %v780, 4
    %v782 = vadd.s32 %v780, %v781
    %v783 = vrot.slane %v782, 2
    %v784 = vadd.s32 %v782, %v783
    %v785 = vrot.slane %v784, 1
    %v786 = vadd.s32 %v784, %v785
    %v787 = vsel %vm329, %v738, %v786
    %788 = vst [vmem:[#allocation8 + $0x3] sm:$0x1] %v787
    %v789 = vld [vmem:[%s327] sm:$0x3]
    %v790 = vunpack.c.0.s8 %v789
    %v791 = vlaneseq
    %v792 = vshrl.u32 %v791, 7
    %v793 = vsub.s32 0, %v792
    %v794 = vrot.slane %v787, %v793
    %vm795 = vcmp.eq.s32.totalorder %v707, %v794
    %v796 = vsel %vm795, %v790, 0
    %v797 = vrot.slane %v796, 4
    %v798 = vadd.s32 %v796, %v797
    %v799 = vrot.slane %v798, 2
    %v800 = vadd.s32 %v798, %v799
    %v801 = vrot.slane %v800, 1
    %v802 = vadd.s32 %v800, %v801
    %v803 = vsel %vm245, %v738, %v802
    %804 = vst [vmem:[#allocation8 + $0x2] sm:$0x1] %v803
    %v805 = vld [vmem:[%s243] sm:$0x3]
    %v806 = vunpack.c.0.s8 %v805
    %v807 = vlaneseq
    %v808 = vshrl.u32 %v807, 7
    %v809 = vsub.s32 0, %v808
    %v810 = vrot.slane %v803, %v809
    %vm811 = vcmp.eq.s32.totalorder %v707, %v810
    %v812 = vsel %vm811, %v806, 0
    %v813 = vrot.slane %v812, 4
    %v814 = vadd.s32 %v812, %v813
    %v815 = vrot.slane %v814, 2
    %v816 = vadd.s32 %v814, %v815
    %v817 = vrot.slane %v816, 1
    %v818 = vadd.s32 %v816, %v817
    %v819 = vsel %vm161, %v738, %v818
    %820 = vst [vmem:[#allocation8 + $0x1] sm:$0x1] %v819
    %v821 = vld [vmem:[#allocation2] sm:$0x3]
    %v822 = vunpack.c.0.s8 %v821
    %v823 = vlaneseq
    %v824 = vshrl.u32 %v823, 7
    %v825 = vsub.s32 0, %v824
    %v826 = vrot.slane %v819, %v825
    %vm827 = vcmp.eq.s32.totalorder %v707, %v826
    %v828 = vsel %vm827, %v822, 0
    %v829 = vrot.slane %v828, 4
    %v830 = vadd.s32 %v828, %v829
    %v831 = vrot.slane %v830, 2
    %v832 = vadd.s32 %v830, %v831
    %v833 = vrot.slane %v832, 1
    %v834 = vadd.s32 %v832, %v833
    %vm835 = vcmp.eq.s32.totalorder %v160, 0
    %v836 = vsel %vm835, %v738, %v834
    %837 = vst [vmem:[#allocation8] sm:$0x1] %v836
    // Predicated region
    $region26: #{tpu_custom_call.1} parent=1 // pred_check
      _
    $region27: #{tpu_custom_call.1} parent=1 // pred_check_branch
      %839 = sbr.rel (0) target = $region29
    $region28: #{tpu_custom_call.1} parent=1 // pred_region
      %s841 = ssub.s32 128, 128
      %842 = vsyncadd [#allocation5], %s841
      %s844 = sshll.u32 [#allocation8], 4
      %s845 = int_to_ptr.vmem [resolvable:$true] %s844
      %847 = dma.vmem_to_hbm [thread:$0]  %s845, 128, %s4, [#allocation5]
    $region29: #{tpu_custom_call.1} parent=1 // pred_fallthru
      _
    // Predicated region
    $region30: #{tpu_custom_call.1} parent=1 // pred_check
      _
    $region31: #{tpu_custom_call.1} parent=1 // pred_check_branch
      %849 = sbr.rel (0) target = $region33
    $region32: #{tpu_custom_call.1} parent=1 // pred_region
      %s851 = ssub.s32 16, 16
      %852 = vsyncadd [#allocation10], %s851
      %s854 = sshll.u32 [#allocation9], 4
      %s855 = int_to_ptr.vmem [resolvable:$true] %s854
      %857 = dma.vmem_to_hbm [thread:$0]  %s855, 16, %s5, [#allocation10]
    $region33: #{tpu_custom_call.1} parent=1 // pred_fallthru
      _
    // Predicated region
    $region34: #{tpu_custom_call.1} parent=1 // pred_check
      _
    $region35: #{tpu_custom_call.1} parent=1 // pred_check_branch
      %859 = sbr.rel (0) target = $region37
    $region36: #{tpu_custom_call.1} parent=1 // pred_region
      %860 = dma.done [#allocation5], 128
    $region37: #{tpu_custom_call.1} parent=1 // pred_fallthru
      _
    // Predicated region
    $region38: #{tpu_custom_call.1} parent=1 // pred_check
      _
    $region39: #{tpu_custom_call.1} parent=1 // pred_check_branch
      %862 = sbr.rel (0) target = $region41
    $region40: #{tpu_custom_call.1} parent=1 // pred_region
      %863 = dma.done [#allocation10], 16
    $region41: #{tpu_custom_call.1} parent=1 // pred_fallthru
      _
    %864 = vsyncpa [#allocation4], 1
    %865 = vsyncpa [#allocation7], 1
    %866 = vsyncpa [#allocation5], 1
    %867 = vsyncpa [#allocation10], 1

</llo_original>
